<compile_context>
chip_gen: v6e
topology: v6e:2x2x1
jax: 0.10.0
libtpu: 0.0.40
codegen_flags: <defaults>
</compile_context>

<pallas_src>
import functools

import jax
import jax.numpy as jnp
from jax import lax
from jax.experimental import pallas as pl
from jax.experimental.pallas import tpu as pltpu


def _round_up(x, m):
    return ((x + m - 1) // m) * m


def _double_conv_kernel(x_ref, w1_ref, b1_ref, w2_ref, b2_ref, mask_ref,
                        o_ref, xext_ref, patch_ref, *, H, W, Cout, Nb,
                        apply_relu2):
    """Fused (conv3x3 + BN + ReLU) x 2 on a block of Nb images.

    x_ref:    (Nb, Cp, Lx)           pre-padded input: [halo P | padded img S | halo]
    w1_ref:   (Cp, 9*Cp)             conv1 weights, BN1 scale folded, tap-major
    b1_ref:   (Cp, 1)                folded BN1 bias (f32)
    w2_ref:   (Cp, 9*Cp)             conv2 weights, BN2 scale folded
    b2_ref:   (Cp, 1)                folded BN2 bias (f32)
    mask_ref: (1, Nb*SB)             1.0 on interior of each padded grid band
    o_ref:    (Nb, Cout, S)          full padded-grid output (halo sliced in wrapper)
    xext_ref: (Cp, 2*LEAD + Nb*SB)   layer-1 activation, 128-aligned bands + halos
    patch_ref:(9*Cp, Nb*SB)          im2col patch matrix (lane-aligned bands)
    """
    Hp, Wp = H + 2, W + 2
    S = Hp * Wp                       # padded-grid size (matmul N per image)
    P = Wp + 1                        # halo needed for the 3x3 tap shifts
    SB = _round_up(S, 128)            # lane-aligned per-image band stride
    LEAD = _round_up(P, 128)          # aligned halo before the first band
    Cp = w1_ref.shape[0]
    op_dt = patch_ref.dtype

    # One-time scratch init: halo/gap regions and step-0 patch contents must be
    # finite (zero) so the zero K-padding of the weights and the border mask
    # behave; scratch persists across grid steps, so this runs once.
    @pl.when(pl.program_id(0) == 0)
    def _():
        xext_ref[...] = jnp.zeros_like(xext_ref)
        patch_ref[...] = jnp.zeros_like(patch_ref)

    # ---- layer-1 im2col: 9 shifted, lane-dense slices per image, read
    # straight from the wrapper-pre-padded input (no staging copy).
    for img in range(Nb):
        base = img * SB
        for ky in range(3):
            for kx in range(3):
                t = ky * 3 + kx
                src = ky * Wp + kx
                patch_ref[t * Cp:(t + 1) * Cp, base:base + S] = (
                    x_ref[img, :, src:src + S])

    def conv(w_ref, b_ref):
        return jnp.dot(w_ref[...], patch_ref[...],
                       preferred_element_type=jnp.float32) + b_ref[...]

    mask = mask_ref[...]                                   # (1, Nb*SB) f32

    # ---- layer 1: conv1 + bn1 + relu; border of the padded grid forced to
    # zero so conv2's zero padding comes for free.  Epilogue kept in f32
    # (v5e has no bf16 VPU).
    y1 = jnp.maximum(conv(w1_ref, b1_ref), 0.0) * mask     # (Cp, Nb*SB) f32

    # Stage layer-1 output into the extended buffer, lane-aligned band starts.
    for img in range(Nb):
        dst = LEAD + img * SB
        xext_ref[:, dst:dst + S] = y1[:, img * SB:img * SB + S].astype(op_dt)

    # ---- layer-2 im2col: one lane-dense copy per tap covering ALL images.
    for ky in range(3):
        for kx in range(3):
            t = ky * 3 + kx
            d = (ky - 1) * Wp + (kx - 1)
            patch_ref[t * Cp:(t + 1) * Cp, :] = (
                xext_ref[:, LEAD + d:LEAD + d + Nb * SB])

    # ---- layer 2: conv2 + bn2 (+ relu)
    y2 = conv(w2_ref, b2_ref)
    if apply_relu2:
        y2 = jnp.maximum(y2, 0.0)

    # ---- lane-dense stores of the full padded grid (324 lanes each);
    # the wrapper slices the halo away (never exposed).
    for img in range(Nb):
        o_ref[img, :, :] = y2[0:Cout, img * SB:img * SB + S]


def _pack_conv_bn_weights(w_hwio, scale, cin, cout, cp, dtype):
    """HWIO (3,3,cin,cout) -> (cp, 9*cp): BN scale folded, channels zero-padded."""
    w = jnp.transpose(w_hwio, (3, 0, 1, 2)).astype(jnp.float32)   # (cout,3,3,cin)
    w = w * scale.astype(jnp.float32)[:, None, None, None]
    w = jnp.pad(w, ((0, cp - cout), (0, 0), (0, 0), (0, cp - cin)))
    return w.reshape(cp, 9 * cp).astype(dtype)


def double_conv3x3_bn_relu(x_nchw, w1_hwio, w2_hwio, scale1, bias1, scale2,
                           bias2, *, drop_final_activation=False,
                           use_bf16_mxu=True, batch_block=None):
    """Fused DoubleConvolutionBlock forward.  x_nchw: (N, Cin, H, W)."""
    N, Cin, H, W = x_nchw.shape
    Cout = w1_hwio.shape[-1]
    op_dtype = jnp.bfloat16 if use_bf16_mxu else jnp.float32
    # bf16 sublane tile is (16, 128); f32 is (8, 128).
    Cp = _round_up(max(Cin, Cout), 16 if use_bf16_mxu else 8)

    Hp, Wp = H + 2, W + 2
    S = Hp * Wp
    P = Wp + 1
    SB = _round_up(S, 128)                 # lane-aligned band stride
    LEAD = _round_up(P, 128)
    Lx = _round_up(S + 2 * P, 128)         # per-image pre-padded lane width

    if batch_block is None:
        # Amortize per-grid-step overhead, but keep >= 2 grid steps when
        # N >= 2 so both v7x TensorCores get work on the parallel batch axis.
        batch_block = max(1, min(8, (N + 1) // 2))
    Nb = batch_block
    Npad = _round_up(N, Nb)
    n_steps = Npad // Nb

    # ---- wrapper-side layout prep: cheap XLA pads only, no transposes ------
    x = x_nchw.astype(jnp.float32)
    x = jnp.pad(x, ((0, Npad - N), (0, Cp - Cin), (1, 1), (1, 1)))
    x = x.reshape(Npad, Cp, S)
    x = jnp.pad(x, ((0, 0), (0, 0), (P, Lx - P - S))).astype(op_dtype)

    w1 = _pack_conv_bn_weights(w1_hwio, scale1, Cin, Cout, Cp, op_dtype)
    w2 = _pack_conv_bn_weights(w2_hwio, scale2, Cout, Cout, Cp, op_dtype)
    b1 = jnp.pad(bias1.astype(jnp.float32), (0, Cp - Cout)).reshape(Cp, 1)
    b2 = jnp.pad(bias2.astype(jnp.float32), (0, Cp - Cout)).reshape(Cp, 1)

    interior = jnp.zeros((Hp, Wp), jnp.float32).at[1:-1, 1:-1].set(1.0)
    mask_band = jnp.zeros((SB,), jnp.float32).at[:S].set(interior.reshape(-1))
    mask = jnp.tile(mask_band, (Nb,)).reshape(1, Nb * SB)

    kernel = functools.partial(_double_conv_kernel, H=H, W=W, Cout=Cout,
                               Nb=Nb, apply_relu2=not drop_final_activation)

    out_pad = pl.pallas_call(
        kernel,
        out_shape=jax.ShapeDtypeStruct((Npad, Cout, S), jnp.float32),
        grid_spec=pltpu.PrefetchScalarGridSpec(
            num_scalar_prefetch=0,
            grid=(n_steps,),
            in_specs=[
                pl.BlockSpec((Nb, Cp, Lx), lambda n: (n, 0, 0)),
                pl.BlockSpec((Cp, 9 * Cp), lambda n: (0, 0)),
                pl.BlockSpec((Cp, 1), lambda n: (0, 0)),
                pl.BlockSpec((Cp, 9 * Cp), lambda n: (0, 0)),
                pl.BlockSpec((Cp, 1), lambda n: (0, 0)),
                pl.BlockSpec((1, Nb * SB), lambda n: (0, 0)),
            ],
            out_specs=pl.BlockSpec((Nb, Cout, S), lambda n: (n, 0, 0)),
            scratch_shapes=[
                pltpu.VMEM((Cp, 2 * LEAD + Nb * SB), op_dtype),  # ext. act.
                pltpu.VMEM((9 * Cp, Nb * SB), op_dtype),         # im2col
            ],
        ),
        compiler_params=pltpu.CompilerParams(
            dimension_semantics=("parallel",)),
    )(x, w1, b1, w2, b2, mask)

    # Padded-grid layout -> NCHW interior: halo sliced away, never exposed.
    return out_pad[:N].reshape(N, Cout, Hp, Wp)[:, :, 1:-1, 1:-1]


def _fold_bn(gamma, beta, running_mean, running_var, eps=1e-5):
    scale = gamma * lax.rsqrt(running_var + eps)
    bias = beta - running_mean * scale
    return scale, bias


class DoubleConvolutionBlockPallas:
    """Pallas port of DoubleConvolutionBlock (eval-mode BatchNorm)."""

    def __init__(self, in_planes, out_planes, last_affine=True,
                 drop_final_activation=False, use_bf16_mxu=True, key=None):
        if key is None:
            key = jax.random.PRNGKey(0)
        keys = jax.random.split(key, 10)

        fan1 = in_planes * 9
        fan2 = out_planes * 9
        self.w1 = jax.random.normal(keys[0], (3, 3, in_planes, out_planes),
                                    jnp.float32) / jnp.sqrt(fan1)
        self.w2 = jax.random.normal(keys[1], (3, 3, out_planes, out_planes),
                                    jnp.float32) / jnp.sqrt(fan2)

        # bn1: affine + running stats
        self.g1 = 1.0 + 0.1 * jax.random.normal(keys[2], (out_planes,), jnp.float32)
        self.b1 = 0.1 * jax.random.normal(keys[3], (out_planes,), jnp.float32)
        self.rm1 = 0.05 * jax.random.normal(keys[4], (out_planes,), jnp.float32)
        self.rv1 = 1.0 + 0.1 * jax.random.uniform(keys[5], (out_planes,), jnp.float32)

        # bn2: affine iff last_affine, plus (non-trivial) running stats
        if last_affine:
            self.g2 = 1.0 + 0.1 * jax.random.normal(keys[6], (out_planes,), jnp.float32)
            self.b2 = 0.1 * jax.random.normal(keys[7], (out_planes,), jnp.float32)
        else:
            self.g2 = jnp.ones((out_planes,), jnp.float32)
            self.b2 = jnp.zeros((out_planes,), jnp.float32)
        self.rm2 = 0.05 * jax.random.normal(keys[8], (out_planes,), jnp.float32)
        self.rv2 = 1.0 + 0.1 * jax.random.uniform(keys[9], (out_planes,), jnp.float32)

        self.drop_final_activation = drop_final_activation
        self.use_bf16_mxu = use_bf16_mxu

    def __call__(self, x_nchw, use_bf16_mxu=None):
        if use_bf16_mxu is None:
            use_bf16_mxu = self.use_bf16_mxu
        s1, o1 = _fold_bn(self.g1, self.b1, self.rm1, self.rv1)
        s2, o2 = _fold_bn(self.g2, self.b2, self.rm2, self.rv2)
        return double_conv3x3_bn_relu(
            x_nchw.astype(jnp.float32), self.w1, self.w2, s1, o1, s2, o2,
            drop_final_activation=self.drop_final_activation,
            use_bf16_mxu=use_bf16_mxu)


def _reference_forward(block, x_nchw):
    """Pure-JAX reference (lax.conv) with identical eval-mode BN semantics."""
    def conv(x, w_hwio):
        w_oihw = jnp.transpose(w_hwio, (3, 2, 0, 1))
        return lax.conv_general_dilated(
            x, w_oihw, window_strides=(1, 1), padding=((1, 1), (1, 1)),
            dimension_numbers=("NCHW", "OIHW", "NCHW"))

    def bn(x, g, b, rm, rv, eps=1e-5):
        s = g * lax.rsqrt(rv + eps)
        o = b - rm * s
        return x * s[None, :, None, None] + o[None, :, None, None]

    y = jnp.maximum(bn(conv(x_nchw, block.w1), block.g1, block.b1,
                       block.rm1, block.rv1), 0.0)
    y = bn(conv(y, block.w2), block.g2, block.b2, block.rm2, block.rv2)
    if not block.drop_final_activation:
        y = jnp.maximum(y, 0.0)
    return y


if __name__ == "__main__":
    key = jax.random.PRNGKey(0)
    k_x, k_p = jax.random.split(key)

    N, C_IN, C_OUT, H, W = 2, 4, 8, 16, 16
    x = jax.random.normal(k_x, (N, C_IN, H, W), jnp.float32)

    block = DoubleConvolutionBlockPallas(C_IN, C_OUT, last_affine=True,
                                         drop_final_activation=False, key=k_p)

    ref = jax.block_until_ready(_reference_forward(block, x))

    # f32 MXU operands: tight validation of indexing / layout.
    out_f32 = jax.block_until_ready(block(x, use_bf16_mxu=False))
    assert out_f32.shape == (N, C_OUT, H, W), out_f32.shape
    assert jnp.allclose(out_f32, ref, atol=1e-4, rtol=1e-4), \
        f"f32 max abs err = {jnp.max(jnp.abs(out_f32 - ref))}"

    # bf16 MXU operands (v6e/v7x fast path): looser tolerance for bf16 rounding.
    out_bf16 = jax.block_until_ready(block(x, use_bf16_mxu=True))
    assert out_bf16.shape == (N, C_OUT, H, W), out_bf16.shape
    assert jnp.allclose(out_bf16, ref, atol=5e-2, rtol=5e-2), \
        f"bf16 max abs err = {jnp.max(jnp.abs(out_bf16 - ref))}"

    print("KERNEL_OK")
</pallas_src>

<mosaic_0001>
module attributes {stable_mosaic.version = 11 : i64} {
  func.func @_double_conv_kernel(%arg0: i32, %arg1: memref<1x8x384xf32, #tpu.memory_space<vmem>>, %arg2: memref<8x72xf32, #tpu.memory_space<vmem>>, %arg3: memref<8x1xf32, #tpu.memory_space<vmem>>, %arg4: memref<8x72xf32, #tpu.memory_space<vmem>>, %arg5: memref<8x1xf32, #tpu.memory_space<vmem>>, %arg6: memref<1x384xf32, #tpu.memory_space<vmem>>, %arg7: memref<1x8x324xf32, #tpu.memory_space<vmem>>, %arg8: memref<8x640xf32, #tpu.memory_space<vmem>>, %arg9: memref<72x384xf32, #tpu.memory_space<vmem>>) attributes {dimension_semantics = [#tpu.dimension_semantics<parallel>], iteration_bounds = array<i64: 2>, scalar_prefetch = 0 : i64, scratch_operands = 2 : i64, tpu.core_type = #tpu.core_type<tc>, window_params = [{transform_indices = @transform_0, window_bounds = array<i64: 1, 8, 384>}, {pipeline_mode = #tpu.pipeline_mode<synchronous>, transform_indices = @transform_1, window_bounds = array<i64: 8, 72>}, {pipeline_mode = #tpu.pipeline_mode<synchronous>, transform_indices = @transform_2, window_bounds = array<i64: 8, 1>}, {pipeline_mode = #tpu.pipeline_mode<synchronous>, transform_indices = @transform_3, window_bounds = array<i64: 8, 72>}, {pipeline_mode = #tpu.pipeline_mode<synchronous>, transform_indices = @transform_4, window_bounds = array<i64: 8, 1>}, {pipeline_mode = #tpu.pipeline_mode<synchronous>, transform_indices = @transform_5, window_bounds = array<i64: 1, 384>}, {transform_indices = @transform_6, window_bounds = array<i64: 1, 8, 324>}]} {
    %c0_i32 = arith.constant 0 : i32
    %0 = arith.cmpi eq, %arg0, %c0_i32 : i32
    %1 = arith.extui %0 : i1 to i32
    %c0_i32_0 = arith.constant 0 : i32
    %2 = arith.cmpi ne, %1, %c0_i32_0 : i32
    scf.if %2 {
      %cst_78 = arith.constant 0.000000e+00 : f32
      %73 = vector.broadcast %cst_78 : f32 to vector<8x640xf32>
      %c0_79 = arith.constant 0 : index
      %c0_80 = arith.constant 0 : index
      %74 = vector.load %arg8[%c0_79, %c0_80] : memref<8x640xf32, #tpu.memory_space<vmem>>, vector<8x640xf32>
      tpu.vector_store %arg8[%c0_79, %c0_80], %73 {strides = array<i32>} : memref<8x640xf32, #tpu.memory_space<vmem>>, vector<8x640xf32>,
      %cst_81 = arith.constant 0.000000e+00 : f32
      %75 = vector.broadcast %cst_81 : f32 to vector<72x384xf32>
      %c0_82 = arith.constant 0 : index
      %c0_83 = arith.constant 0 : index
      %76 = vector.load %arg9[%c0_82, %c0_83] : memref<72x384xf32, #tpu.memory_space<vmem>>, vector<72x384xf32>
      tpu.vector_store %arg9[%c0_82, %c0_83], %75 {strides = array<i32>} : memref<72x384xf32, #tpu.memory_space<vmem>>, vector<72x384xf32>,
    } else {
    }
    %c0 = arith.constant 0 : index
    %c0_1 = arith.constant 0 : index
    %c0_2 = arith.constant 0 : index
    %3 = vector.load %arg1[%c0, %c0_1, %c0_2] : memref<1x8x384xf32, #tpu.memory_space<vmem>>, vector<1x8x324xf32>
    %4 = vector.shape_cast %3 : vector<1x8x324xf32> to vector<8x324xf32>
    %c0_3 = arith.constant 0 : index
    %c0_4 = arith.constant 0 : index
    %5 = vector.load %arg9[%c0_3, %c0_4] : memref<72x384xf32, #tpu.memory_space<vmem>>, vector<8x324xf32>
    tpu.vector_store %arg9[%c0_3, %c0_4], %4 {strides = array<i32>} : memref<72x384xf32, #tpu.memory_space<vmem>>, vector<8x324xf32>,
    %c0_5 = arith.constant 0 : index
    %c0_6 = arith.constant 0 : index
    %c1 = arith.constant 1 : index
    %6 = vector.load %arg1[%c0_5, %c0_6, %c1] : memref<1x8x384xf32, #tpu.memory_space<vmem>>, vector<1x8x324xf32>
    %7 = vector.shape_cast %6 : vector<1x8x324xf32> to vector<8x324xf32>
    %c8 = arith.constant 8 : index
    %c0_7 = arith.constant 0 : index
    %8 = vector.load %arg9[%c8, %c0_7] : memref<72x384xf32, #tpu.memory_space<vmem>>, vector<8x324xf32>
    tpu.vector_store %arg9[%c8, %c0_7], %7 {strides = array<i32>} : memref<72x384xf32, #tpu.memory_space<vmem>>, vector<8x324xf32>,
    %c0_8 = arith.constant 0 : index
    %c0_9 = arith.constant 0 : index
    %c2 = arith.constant 2 : index
    %9 = vector.load %arg1[%c0_8, %c0_9, %c2] : memref<1x8x384xf32, #tpu.memory_space<vmem>>, vector<1x8x324xf32>
    %10 = vector.shape_cast %9 : vector<1x8x324xf32> to vector<8x324xf32>
    %c16 = arith.constant 16 : index
    %c0_10 = arith.constant 0 : index
    %11 = vector.load %arg9[%c16, %c0_10] : memref<72x384xf32, #tpu.memory_space<vmem>>, vector<8x324xf32>
    tpu.vector_store %arg9[%c16, %c0_10], %10 {strides = array<i32>} : memref<72x384xf32, #tpu.memory_space<vmem>>, vector<8x324xf32>,
    %c0_11 = arith.constant 0 : index
    %c0_12 = arith.constant 0 : index
    %c18 = arith.constant 18 : index
    %12 = vector.load %arg1[%c0_11, %c0_12, %c18] : memref<1x8x384xf32, #tpu.memory_space<vmem>>, vector<1x8x324xf32>
    %13 = vector.shape_cast %12 : vector<1x8x324xf32> to vector<8x324xf32>
    %c24 = arith.constant 24 : index
    %c0_13 = arith.constant 0 : index
    %14 = vector.load %arg9[%c24, %c0_13] : memref<72x384xf32, #tpu.memory_space<vmem>>, vector<8x324xf32>
    tpu.vector_store %arg9[%c24, %c0_13], %13 {strides = array<i32>} : memref<72x384xf32, #tpu.memory_space<vmem>>, vector<8x324xf32>,
    %c0_14 = arith.constant 0 : index
    %c0_15 = arith.constant 0 : index
    %c19 = arith.constant 19 : index
    %15 = vector.load %arg1[%c0_14, %c0_15, %c19] : memref<1x8x384xf32, #tpu.memory_space<vmem>>, vector<1x8x324xf32>
    %16 = vector.shape_cast %15 : vector<1x8x324xf32> to vector<8x324xf32>
    %c32 = arith.constant 32 : index
    %c0_16 = arith.constant 0 : index
    %17 = vector.load %arg9[%c32, %c0_16] : memref<72x384xf32, #tpu.memory_space<vmem>>, vector<8x324xf32>
    tpu.vector_store %arg9[%c32, %c0_16], %16 {strides = array<i32>} : memref<72x384xf32, #tpu.memory_space<vmem>>, vector<8x324xf32>,
    %c0_17 = arith.constant 0 : index
    %c0_18 = arith.constant 0 : index
    %c20 = arith.constant 20 : index
    %18 = vector.load %arg1[%c0_17, %c0_18, %c20] : memref<1x8x384xf32, #tpu.memory_space<vmem>>, vector<1x8x324xf32>
    %19 = vector.shape_cast %18 : vector<1x8x324xf32> to vector<8x324xf32>
    %c40 = arith.constant 40 : index
    %c0_19 = arith.constant 0 : index
    %20 = vector.load %arg9[%c40, %c0_19] : memref<72x384xf32, #tpu.memory_space<vmem>>, vector<8x324xf32>
    tpu.vector_store %arg9[%c40, %c0_19], %19 {strides = array<i32>} : memref<72x384xf32, #tpu.memory_space<vmem>>, vector<8x324xf32>,
    %c0_20 = arith.constant 0 : index
    %c0_21 = arith.constant 0 : index
    %c36 = arith.constant 36 : index
    %21 = vector.load %arg1[%c0_20, %c0_21, %c36] : memref<1x8x384xf32, #tpu.memory_space<vmem>>, vector<1x8x324xf32>
    %22 = vector.shape_cast %21 : vector<1x8x324xf32> to vector<8x324xf32>
    %c48 = arith.constant 48 : index
    %c0_22 = arith.constant 0 : index
    %23 = vector.load %arg9[%c48, %c0_22] : memref<72x384xf32, #tpu.memory_space<vmem>>, vector<8x324xf32>
    tpu.vector_store %arg9[%c48, %c0_22], %22 {strides = array<i32>} : memref<72x384xf32, #tpu.memory_space<vmem>>, vector<8x324xf32>,
    %c0_23 = arith.constant 0 : index
    %c0_24 = arith.constant 0 : index
    %c37 = arith.constant 37 : index
    %24 = vector.load %arg1[%c0_23, %c0_24, %c37] : memref<1x8x384xf32, #tpu.memory_space<vmem>>, vector<1x8x324xf32>
    %25 = vector.shape_cast %24 : vector<1x8x324xf32> to vector<8x324xf32>
    %c56 = arith.constant 56 : index
    %c0_25 = arith.constant 0 : index
    %26 = vector.load %arg9[%c56, %c0_25] : memref<72x384xf32, #tpu.memory_space<vmem>>, vector<8x324xf32>
    tpu.vector_store %arg9[%c56, %c0_25], %25 {strides = array<i32>} : memref<72x384xf32, #tpu.memory_space<vmem>>, vector<8x324xf32>,
    %c0_26 = arith.constant 0 : index
    %c0_27 = arith.constant 0 : index
    %c38 = arith.constant 38 : index
    %27 = vector.load %arg1[%c0_26, %c0_27, %c38] : memref<1x8x384xf32, #tpu.memory_space<vmem>>, vector<1x8x324xf32>
    %28 = vector.shape_cast %27 : vector<1x8x324xf32> to vector<8x324xf32>
    %c64 = arith.constant 64 : index
    %c0_28 = arith.constant 0 : index
    %29 = vector.load %arg9[%c64, %c0_28] : memref<72x384xf32, #tpu.memory_space<vmem>>, vector<8x324xf32>
    tpu.vector_store %arg9[%c64, %c0_28], %28 {strides = array<i32>} : memref<72x384xf32, #tpu.memory_space<vmem>>, vector<8x324xf32>,
    %c0_29 = arith.constant 0 : index
    %c0_30 = arith.constant 0 : index
    %30 = vector.load %arg6[%c0_29, %c0_30] : memref<1x384xf32, #tpu.memory_space<vmem>>, vector<1x384xf32>
    %c0_31 = arith.constant 0 : index
    %c0_32 = arith.constant 0 : index
    %31 = vector.load %arg2[%c0_31, %c0_32] : memref<8x72xf32, #tpu.memory_space<vmem>>, vector<8x72xf32>
    %c0_33 = arith.constant 0 : index
    %c0_34 = arith.constant 0 : index
    %32 = vector.load %arg9[%c0_33, %c0_34] : memref<72x384xf32, #tpu.memory_space<vmem>>, vector<72x384xf32>
    %cst = arith.constant dense<0.000000e+00> : vector<8x384xf32>
    %33 = tpu.matmul %31, %32, %cst {dimension_numbers = #tpu.dot_dimension_numbers<[1], [0], [0], [1], [0, 0, 1, 1], [], []>} : vector<8x72xf32>, vector<72x384xf32>, vector<8x384xf32> -> vector<8x384xf32>
    %c0_35 = arith.constant 0 : index
    %c0_36 = arith.constant 0 : index
    %34 = vector.load %arg3[%c0_35, %c0_36] : memref<8x1xf32, #tpu.memory_space<vmem>>, vector<8x1xf32>
    %35 = vector.broadcast %34 : vector<8x1xf32> to vector<8x384xf32>
    %36 = arith.addf %33, %35 : vector<8x384xf32>
    %cst_37 = arith.constant 0.000000e+00 : f32
    %37 = vector.broadcast %cst_37 : f32 to vector<8x384xf32>
    %38 = arith.maximumf %36, %37 : vector<8x384xf32>
    %39 = vector.broadcast %30 : vector<1x384xf32> to vector<8x384xf32>
    %40 = arith.mulf %38, %39 : vector<8x384xf32>
    %41 = vector.extract_strided_slice %40 {offsets = [0, 0], sizes = [8, 324], strides = [1, 1]} : vector<8x384xf32> to vector<8x324xf32>
    %c0_38 = arith.constant 0 : index
    %c128 = arith.constant 128 : index
    %42 = vector.load %arg8[%c0_38, %c128] : memref<8x640xf32, #tpu.memory_space<vmem>>, vector<8x324xf32>
    tpu.vector_store %arg8[%c0_38, %c128], %41 {strides = array<i32>} : memref<8x640xf32, #tpu.memory_space<vmem>>, vector<8x324xf32>,
    %c0_39 = arith.constant 0 : index
    %c109 = arith.constant 109 : index
    %43 = vector.load %arg8[%c0_39, %c109] : memref<8x640xf32, #tpu.memory_space<vmem>>, vector<8x384xf32>
    %c0_40 = arith.constant 0 : index
    %c0_41 = arith.constant 0 : index
    %44 = vector.load %arg9[%c0_40, %c0_41] : memref<72x384xf32, #tpu.memory_space<vmem>>, vector<8x384xf32>
    tpu.vector_store %arg9[%c0_40, %c0_41], %43 {strides = array<i32>} : memref<72x384xf32, #tpu.memory_space<vmem>>, vector<8x384xf32>,
    %c0_42 = arith.constant 0 : index
    %c110 = arith.constant 110 : index
    %45 = vector.load %arg8[%c0_42, %c110] : memref<8x640xf32, #tpu.memory_space<vmem>>, vector<8x384xf32>
    %c8_43 = arith.constant 8 : index
    %c0_44 = arith.constant 0 : index
    %46 = vector.load %arg9[%c8_43, %c0_44] : memref<72x384xf32, #tpu.memory_space<vmem>>, vector<8x384xf32>
    tpu.vector_store %arg9[%c8_43, %c0_44], %45 {strides = array<i32>} : memref<72x384xf32, #tpu.memory_space<vmem>>, vector<8x384xf32>,
    %c0_45 = arith.constant 0 : index
    %c111 = arith.constant 111 : index
    %47 = vector.load %arg8[%c0_45, %c111] : memref<8x640xf32, #tpu.memory_space<vmem>>, vector<8x384xf32>
    %c16_46 = arith.constant 16 : index
    %c0_47 = arith.constant 0 : index
    %48 = vector.load %arg9[%c16_46, %c0_47] : memref<72x384xf32, #tpu.memory_space<vmem>>, vector<8x384xf32>
    tpu.vector_store %arg9[%c16_46, %c0_47], %47 {strides = array<i32>} : memref<72x384xf32, #tpu.memory_space<vmem>>, vector<8x384xf32>,
    %c0_48 = arith.constant 0 : index
    %c127 = arith.constant 127 : index
    %49 = vector.load %arg8[%c0_48, %c127] : memref<8x640xf32, #tpu.memory_space<vmem>>, vector<8x384xf32>
    %c24_49 = arith.constant 24 : index
    %c0_50 = arith.constant 0 : index
    %50 = vector.load %arg9[%c24_49, %c0_50] : memref<72x384xf32, #tpu.memory_space<vmem>>, vector<8x384xf32>
    tpu.vector_store %arg9[%c24_49, %c0_50], %49 {strides = array<i32>} : memref<72x384xf32, #tpu.memory_space<vmem>>, vector<8x384xf32>,
    %c0_51 = arith.constant 0 : index
    %c128_52 = arith.constant 128 : index
    %51 = vector.load %arg8[%c0_51, %c128_52] : memref<8x640xf32, #tpu.memory_space<vmem>>, vector<8x384xf32>
    %c32_53 = arith.constant 32 : index
    %c0_54 = arith.constant 0 : index
    %52 = vector.load %arg9[%c32_53, %c0_54] : memref<72x384xf32, #tpu.memory_space<vmem>>, vector<8x384xf32>
    tpu.vector_store %arg9[%c32_53, %c0_54], %51 {strides = array<i32>} : memref<72x384xf32, #tpu.memory_space<vmem>>, vector<8x384xf32>,
    %c0_55 = arith.constant 0 : index
    %c129 = arith.constant 129 : index
    %53 = vector.load %arg8[%c0_55, %c129] : memref<8x640xf32, #tpu.memory_space<vmem>>, vector<8x384xf32>
    %c40_56 = arith.constant 40 : index
    %c0_57 = arith.constant 0 : index
    %54 = vector.load %arg9[%c40_56, %c0_57] : memref<72x384xf32, #tpu.memory_space<vmem>>, vector<8x384xf32>
    tpu.vector_store %arg9[%c40_56, %c0_57], %53 {strides = array<i32>} : memref<72x384xf32, #tpu.memory_space<vmem>>, vector<8x384xf32>,
    %c0_58 = arith.constant 0 : index
    %c145 = arith.constant 145 : index
    %55 = vector.load %arg8[%c0_58, %c145] : memref<8x640xf32, #tpu.memory_space<vmem>>, vector<8x384xf32>
    %c48_59 = arith.constant 48 : index
    %c0_60 = arith.constant 0 : index
    %56 = vector.load %arg9[%c48_59, %c0_60] : memref<72x384xf32, #tpu.memory_space<vmem>>, vector<8x384xf32>
    tpu.vector_store %arg9[%c48_59, %c0_60], %55 {strides = array<i32>} : memref<72x384xf32, #tpu.memory_space<vmem>>, vector<8x384xf32>,
    %c0_61 = arith.constant 0 : index
    %c146 = arith.constant 146 : index
    %57 = vector.load %arg8[%c0_61, %c146] : memref<8x640xf32, #tpu.memory_space<vmem>>, vector<8x384xf32>
    %c56_62 = arith.constant 56 : index
    %c0_63 = arith.constant 0 : index
    %58 = vector.load %arg9[%c56_62, %c0_63] : memref<72x384xf32, #tpu.memory_space<vmem>>, vector<8x384xf32>
    tpu.vector_store %arg9[%c56_62, %c0_63], %57 {strides = array<i32>} : memref<72x384xf32, #tpu.memory_space<vmem>>, vector<8x384xf32>,
    %c0_64 = arith.constant 0 : index
    %c147 = arith.constant 147 : index
    %59 = vector.load %arg8[%c0_64, %c147] : memref<8x640xf32, #tpu.memory_space<vmem>>, vector<8x384xf32>
    %c64_65 = arith.constant 64 : index
    %c0_66 = arith.constant 0 : index
    %60 = vector.load %arg9[%c64_65, %c0_66] : memref<72x384xf32, #tpu.memory_space<vmem>>, vector<8x384xf32>
    tpu.vector_store %arg9[%c64_65, %c0_66], %59 {strides = array<i32>} : memref<72x384xf32, #tpu.memory_space<vmem>>, vector<8x384xf32>,
    %c0_67 = arith.constant 0 : index
    %c0_68 = arith.constant 0 : index
    %61 = vector.load %arg4[%c0_67, %c0_68] : memref<8x72xf32, #tpu.memory_space<vmem>>, vector<8x72xf32>
    %c0_69 = arith.constant 0 : index
    %c0_70 = arith.constant 0 : index
    %62 = vector.load %arg9[%c0_69, %c0_70] : memref<72x384xf32, #tpu.memory_space<vmem>>, vector<72x384xf32>
    %cst_71 = arith.constant dense<0.000000e+00> : vector<8x384xf32>
    %63 = tpu.matmul %61, %62, %cst_71 {dimension_numbers = #tpu.dot_dimension_numbers<[1], [0], [0], [1], [0, 0, 1, 1], [], []>} : vector<8x72xf32>, vector<72x384xf32>, vector<8x384xf32> -> vector<8x384xf32>
    %c0_72 = arith.constant 0 : index
    %c0_73 = arith.constant 0 : index
    %64 = vector.load %arg5[%c0_72, %c0_73] : memref<8x1xf32, #tpu.memory_space<vmem>>, vector<8x1xf32>
    %65 = vector.broadcast %64 : vector<8x1xf32> to vector<8x384xf32>
    %66 = arith.addf %63, %65 : vector<8x384xf32>
    %cst_74 = arith.constant 0.000000e+00 : f32
    %67 = vector.broadcast %cst_74 : f32 to vector<8x384xf32>
    %68 = arith.maximumf %66, %67 : vector<8x384xf32>
    %69 = vector.extract_strided_slice %68 {offsets = [0, 0], sizes = [8, 324], strides = [1, 1]} : vector<8x384xf32> to vector<8x324xf32>
    %c0_75 = arith.constant 0 : index
    %c0_76 = arith.constant 0 : index
    %c0_77 = arith.constant 0 : index
    %70 = vector.load %arg7[%c0_75, %c0_76, %c0_77] : memref<1x8x324xf32, #tpu.memory_space<vmem>>, vector<1x8x324xf32>
    %71 = vector.shape_cast %70 : vector<1x8x324xf32> to vector<8x324xf32>
    %72 = vector.shape_cast %69 : vector<8x324xf32> to vector<1x8x324xf32>
    tpu.vector_store %arg7[%c0_75, %c0_76, %c0_77], %72 {strides = array<i32>} : memref<1x8x324xf32, #tpu.memory_space<vmem>>, vector<1x8x324xf32>,
    return
  }
  func.func @transform_0(%arg0: i32) -> (i32, i32, i32) {
    %c0_i32 = arith.constant 0 : i32
    %c0_i32_0 = arith.constant 0 : i32
    %c0_i32_1 = arith.constant 0 : i32
    return %arg0, %c0_i32, %c0_i32_0 : i32, i32, i32
  }
  func.func @transform_1(%arg0: i32) -> (i32, i32) {
    %c0_i32 = arith.constant 0 : i32
    %c0_i32_0 = arith.constant 0 : i32
    %c0_i32_1 = arith.constant 0 : i32
    return %c0_i32, %c0_i32_0 : i32, i32
  }
  func.func @transform_2(%arg0: i32) -> (i32, i32) {
    %c0_i32 = arith.constant 0 : i32
    %c0_i32_0 = arith.constant 0 : i32
    %c0_i32_1 = arith.constant 0 : i32
    return %c0_i32, %c0_i32_0 : i32, i32
  }
  func.func @transform_3(%arg0: i32) -> (i32, i32) {
    %c0_i32 = arith.constant 0 : i32
    %c0_i32_0 = arith.constant 0 : i32
    %c0_i32_1 = arith.constant 0 : i32
    return %c0_i32, %c0_i32_0 : i32, i32
  }
  func.func @transform_4(%arg0: i32) -> (i32, i32) {
    %c0_i32 = arith.constant 0 : i32
    %c0_i32_0 = arith.constant 0 : i32
    %c0_i32_1 = arith.constant 0 : i32
    return %c0_i32, %c0_i32_0 : i32, i32
  }
  func.func @transform_5(%arg0: i32) -> (i32, i32) {
    %c0_i32 = arith.constant 0 : i32
    %c0_i32_0 = arith.constant 0 : i32
    %c0_i32_1 = arith.constant 0 : i32
    return %c0_i32, %c0_i32_0 : i32, i32
  }
  func.func @transform_6(%arg0: i32) -> (i32, i32, i32) {
    %c0_i32 = arith.constant 0 : i32
    %c0_i32_0 = arith.constant 0 : i32
    %c0_i32_1 = arith.constant 0 : i32
    return %arg0, %c0_i32, %c0_i32_0 : i32, i32, i32
  }
}

</mosaic_0001>

<llo_original>
// kernel: tpu_custom_call.1
$region0: #{tpu_custom_call.1}
  #allocation0 [shape = 'u32[]', space=smem, size = 0x4, offset = 0x4, fixed_abs, tag = 'smem constant byte address 0x4 - core index']
  #allocation1 [shape = 'u32[144,128]{1,0:T(1,128)}', space=vmem, size = 0x12000, scoped, tag = 'internal scratch']
  #allocation2 [shape = 'f32[8,640]{1,0:T(8,128)}', space=vmem, size = 0x5000, scoped, tag = 'scratch operand']
  #allocation3 [shape = 'f32[72,384]{1,0:T(8,128)}', space=vmem, size = 0x1b000, scoped, tag = 'scratch operand']
  %s0 = inlined_call_operand.hbm [shape: f32[2,8,384], index: 0, kind: input, shape index: {}]
  %s1 = inlined_call_operand.vmem [shape: f32[8,72], index: 1, kind: input, shape index: {}]
  %s2 = inlined_call_operand.vmem [shape: f32[8,1], index: 2, kind: input, shape index: {}]
  %s3 = inlined_call_operand.vmem [shape: f32[8,72], index: 3, kind: input, shape index: {}]
  %s4 = inlined_call_operand.vmem [shape: f32[8,1], index: 4, kind: input, shape index: {}]
  %s5 = inlined_call_operand.vmem [shape: f32[1,384], index: 5, kind: input, shape index: {}]
  %s6 = inlined_call_operand.hbm [shape: f32[2,8,324], index: 6, kind: output, shape index: {}]
  %s7 = sld [smem:[#allocation0]]
  $region65: #{tpu_custom_call.1} parent=0
    _
  %s9 = ssub.s32 1, %s7
  %s10 = scalar_select 0, %s9, %s7
  $region1: #{tpu_custom_call.1} parent=0
    #allocation4 [shape = 'u8[24576]{0}', space=vmem, size = 0x6000, scoped, tag = 'input window, operand 0']
    #allocation5 [shape = 's32[2]{0}', space=sflag, size = 0x8, scoped, tag = 'scoped memory for tpu_custom_call.1']
    #allocation6 [shape = 's32[2]{0}', space=sflag, size = 0x8, scoped, tag = 'scoped memory for tpu_custom_call.1']
    #allocation7 [shape = 'u8[24576]{0}', space=vmem, size = 0x6000, scoped, tag = 'output window, operand 0']
    %11 = vsyncpa [#allocation5], 0
    %s12 = scalar_lea.sflag [#allocation5], 1
    %13 = vsyncpa %s12, 0
    %14 = vsyncpa [#allocation6], 0
    %s15 = scalar_lea.sflag [#allocation6], 1
    %16 = vsyncpa %s15, 0
    loop: start=0, step=1, limit=4
    $region2: #{tpu_custom_call.1} parent=1 // loop_pre_header
      _
    $region3: #{tpu_custom_call.1} parent=1 // loop_header
      %s18 = sphi 0, %s22
      %p19 = scmp.ge.s32.totalorder %s18, 4
      %s28 = sphi 0, %s30
      %s31 = sphi 0, %s28
      %s32 = sphi 0, %s31
      %s48 = sphi 0, %s32
      %s52 = sphi 0, %s52
      %s54 = sphi 0, %s52
      %s55 = sphi 0, %s54
      %s69 = sphi 0, %s55
      %s73 = sphi 0, %s73
      %s75 = sphi 0, %s73
      %s76 = sphi 0, %s75
      %s90 = sphi 0, %s76
      %s94 = sphi 0, %s94
      %s96 = sphi 0, %s94
      %s97 = sphi 0, %s96
      %s111 = sphi 0, %s97
      %s115 = sphi 0, %s115
      %s117 = sphi 0, %s115
      %s118 = sphi 0, %s117
      %s132 = sphi 0, %s118
      %s136 = sphi 0, %s136
      %s138 = sphi 0, %s136
      %s139 = sphi 0, %s138
      %s153 = sphi 0, %s139
      %s159 = sphi 0, %s161
      %s162 = sphi 0, %s159
      %s163 = sphi 0, %s162
      %s179 = sphi 0, %s163
    $region4: #{tpu_custom_call.1} parent=1 // loop_header_branch
      %21 = sbr.rel (%p19) target = $region8
    $region5: #{tpu_custom_call.1} parent=1 // loop_body
      %s23 = ssub.s32 %s18, 1
      %s24 = ssub.s32 %s18, 2
      %s25 = sadd.s32 %s18, 1
      %s26 = ssub.s32 %s18, %s25
      %p27 = scmp.eq.s32.totalorder %s26, 0
      %s29 = sadd.s32 %s28, 1
      %s30 = scalar_select %p27, %s28, %s29
      %p33 = pneg %p27
      %p34 = scmp.eq.s32.totalorder %s18, 1
      %p35 = por %p33, %p34
      %p36 = scmp.ne.s32.totalorder %s28, %s31
      %p37 = scmp.eq.s32.totalorder %s18, 0
      %p38 = por %p36, %p37
      %p39 = scmp.ne.s32.totalorder %s28, %s31
      %p40 = scmp.eq.s32.totalorder %s23, 1
      %p41 = por %p39, %p40
      %p42 = scmp.ne.s32.totalorder %s31, %s32
      %p43 = scmp.eq.s32.totalorder %s23, 0
      %p44 = por %p42, %p43
      %p45 = scmp.ne.s32.totalorder %s31, %s32
      %p46 = scmp.eq.s32.totalorder %s24, 1
      %p47 = por %p45, %p46
      %p49 = scmp.ne.s32.totalorder %s32, %s48
      %p50 = scmp.eq.s32.totalorder %s24, 0
      %p51 = por %p49, %p50
      %s53 = sadd.s32 %s52, 1
      %p56 = scmp.eq.s32.totalorder %s18, 1
      %p57 = scmp.ne.s32.totalorder %s52, %s54
      %p58 = scmp.eq.s32.totalorder %s18, 0
      %p59 = por %p57, %p58
      %p60 = scmp.ne.s32.totalorder %s52, %s54
      %p61 = scmp.eq.s32.totalorder %s23, 1
      %p62 = por %p60, %p61
      %p63 = scmp.ne.s32.totalorder %s54, %s55
      %p64 = scmp.eq.s32.totalorder %s23, 0
      %p65 = por %p63, %p64
      %p66 = scmp.ne.s32.totalorder %s54, %s55
      %p67 = scmp.eq.s32.totalorder %s24, 1
      %p68 = por %p66, %p67
      %p70 = scmp.ne.s32.totalorder %s55, %s69
      %p71 = scmp.eq.s32.totalorder %s24, 0
      %p72 = por %p70, %p71
      %s74 = sadd.s32 %s73, 1
      %p77 = scmp.eq.s32.totalorder %s18, 1
      %p78 = scmp.ne.s32.totalorder %s73, %s75
      %p79 = scmp.eq.s32.totalorder %s18, 0
      %p80 = por %p78, %p79
      %p81 = scmp.ne.s32.totalorder %s73, %s75
      %p82 = scmp.eq.s32.totalorder %s23, 1
      %p83 = por %p81, %p82
      %p84 = scmp.ne.s32.totalorder %s75, %s76
      %p85 = scmp.eq.s32.totalorder %s23, 0
      %p86 = por %p84, %p85
      %p87 = scmp.ne.s32.totalorder %s75, %s76
      %p88 = scmp.eq.s32.totalorder %s24, 1
      %p89 = por %p87, %p88
      %p91 = scmp.ne.s32.totalorder %s76, %s90
      %p92 = scmp.eq.s32.totalorder %s24, 0
      %p93 = por %p91, %p92
      %s95 = sadd.s32 %s94, 1
      %p98 = scmp.eq.s32.totalorder %s18, 1
      %p99 = scmp.ne.s32.totalorder %s94, %s96
      %p100 = scmp.eq.s32.totalorder %s18, 0
      %p101 = por %p99, %p100
      %p102 = scmp.ne.s32.totalorder %s94, %s96
      %p103 = scmp.eq.s32.totalorder %s23, 1
      %p104 = por %p102, %p103
      %p105 = scmp.ne.s32.totalorder %s96, %s97
      %p106 = scmp.eq.s32.totalorder %s23, 0
      %p107 = por %p105, %p106
      %p108 = scmp.ne.s32.totalorder %s96, %s97
      %p109 = scmp.eq.s32.totalorder %s24, 1
      %p110 = por %p108, %p109
      %p112 = scmp.ne.s32.totalorder %s97, %s111
      %p113 = scmp.eq.s32.totalorder %s24, 0
      %p114 = por %p112, %p113
      %s116 = sadd.s32 %s115, 1
      %p119 = scmp.eq.s32.totalorder %s18, 1
      %p120 = scmp.ne.s32.totalorder %s115, %s117
      %p121 = scmp.eq.s32.totalorder %s18, 0
      %p122 = por %p120, %p121
      %p123 = scmp.ne.s32.totalorder %s115, %s117
      %p124 = scmp.eq.s32.totalorder %s23, 1
      %p125 = por %p123, %p124
      %p126 = scmp.ne.s32.totalorder %s117, %s118
      %p127 = scmp.eq.s32.totalorder %s23, 0
      %p128 = por %p126, %p127
      %p129 = scmp.ne.s32.totalorder %s117, %s118
      %p130 = scmp.eq.s32.totalorder %s24, 1
      %p131 = por %p129, %p130
      %p133 = scmp.ne.s32.totalorder %s118, %s132
      %p134 = scmp.eq.s32.totalorder %s24, 0
      %p135 = por %p133, %p134
      %s137 = sadd.s32 %s136, 1
      %p140 = scmp.eq.s32.totalorder %s18, 1
      %p141 = scmp.ne.s32.totalorder %s136, %s138
      %p142 = scmp.eq.s32.totalorder %s18, 0
      %p143 = por %p141, %p142
      %p144 = scmp.ne.s32.totalorder %s136, %s138
      %p145 = scmp.eq.s32.totalorder %s23, 1
      %p146 = por %p144, %p145
      %p147 = scmp.ne.s32.totalorder %s138, %s139
      %p148 = scmp.eq.s32.totalorder %s23, 0
      %p149 = por %p147, %p148
      %p150 = scmp.ne.s32.totalorder %s138, %s139
      %p151 = scmp.eq.s32.totalorder %s24, 1
      %p152 = por %p150, %p151
      %p154 = scmp.ne.s32.totalorder %s139, %s153
      %p155 = scmp.eq.s32.totalorder %s24, 0
      %p156 = por %p154, %p155
      %s157 = ssub.s32 %s18, %s25
      %p158 = scmp.eq.s32.totalorder %s157, 0
      %s160 = sadd.s32 %s159, 1
      %s161 = scalar_select %p158, %s159, %s160
      %p164 = pneg %p158
      %p165 = scmp.eq.s32.totalorder %s18, 1
      %p166 = por %p164, %p165
      %p167 = scmp.ne.s32.totalorder %s159, %s162
      %p168 = scmp.eq.s32.totalorder %s18, 0
      %p169 = por %p167, %p168
      %p170 = scmp.ne.s32.totalorder %s159, %s162
      %p171 = scmp.eq.s32.totalorder %s23, 1
      %p172 = por %p170, %p171
      %p173 = scmp.ne.s32.totalorder %s162, %s163
      %p174 = scmp.eq.s32.totalorder %s23, 0
      %p175 = por %p173, %p174
      %p176 = scmp.ne.s32.totalorder %s162, %s163
      %p177 = scmp.eq.s32.totalorder %s24, 1
      %p178 = por %p176, %p177
      %p180 = scmp.ne.s32.totalorder %s163, %s179
      %p181 = scmp.eq.s32.totalorder %s24, 0
      %p182 = por %p180, %p181
      %p183 = scmp.le.s32.totalorder 1, %s18
      %p184 = scmp.lt.s32.totalorder %s18, 3
      %p185 = pnand %p183, %p184
      %p186 = pneg %p185
      // Predicated region
      $region9: #{tpu_custom_call.1} parent=5 // pred_check
        _
      $region10: #{tpu_custom_call.1} parent=5 // pred_check_branch
        %188 = sbr.rel (%p185) target = $region12
      $region11: #{tpu_custom_call.1} parent=5 // pred_region
        %s189 = ssub.s32 %s18, 1
        // Predicated region
        $region13: #{tpu_custom_call.1} parent=11 // pred_check
          %p190 = pneg %p65
        $region14: #{tpu_custom_call.1} parent=11 // pred_check_branch
          %192 = sbr.rel (%p190) target = $region16
        $region15: #{tpu_custom_call.1} parent=11 // pred_region
          _
        $region16: #{tpu_custom_call.1} parent=11 // pred_fallthru
          _
        // Predicated region
        $region17: #{tpu_custom_call.1} parent=11 // pred_check
          %p193 = pneg %p86
        $region18: #{tpu_custom_call.1} parent=11 // pred_check_branch
          %195 = sbr.rel (%p193) target = $region20
        $region19: #{tpu_custom_call.1} parent=11 // pred_region
          _
        $region20: #{tpu_custom_call.1} parent=11 // pred_fallthru
          _
        // Predicated region
        $region21: #{tpu_custom_call.1} parent=11 // pred_check
          %p196 = pneg %p107
        $region22: #{tpu_custom_call.1} parent=11 // pred_check_branch
          %198 = sbr.rel (%p196) target = $region24
        $region23: #{tpu_custom_call.1} parent=11 // pred_region
          _
        $region24: #{tpu_custom_call.1} parent=11 // pred_fallthru
          _
        // Predicated region
        $region25: #{tpu_custom_call.1} parent=11 // pred_check
          %p199 = pneg %p128
        $region26: #{tpu_custom_call.1} parent=11 // pred_check_branch
          %201 = sbr.rel (%p199) target = $region28
        $region27: #{tpu_custom_call.1} parent=11 // pred_region
          _
        $region28: #{tpu_custom_call.1} parent=11 // pred_fallthru
          _
        // Predicated region
        $region29: #{tpu_custom_call.1} parent=11 // pred_check
          %p202 = pneg %p149
        $region30: #{tpu_custom_call.1} parent=11 // pred_check_branch
          %204 = sbr.rel (%p202) target = $region32
        $region31: #{tpu_custom_call.1} parent=11 // pred_region
          _
        $region32: #{tpu_custom_call.1} parent=11 // pred_fallthru
          _
      $region12: #{tpu_custom_call.1} parent=5 // pred_fallthru
        _
      %p205 = scmp.lt.s32.totalorder %s18, 2
      // Predicated region
      $region33: #{tpu_custom_call.1} parent=5 // pred_check
        %p206 = pneg %p205
      $region34: #{tpu_custom_call.1} parent=5 // pred_check_branch
        %208 = sbr.rel (%p206) target = $region36
      $region35: #{tpu_custom_call.1} parent=5 // pred_region
        // Predicated region
        $region37: #{tpu_custom_call.1} parent=35 // pred_check
          %p209 = pneg %p38
        $region38: #{tpu_custom_call.1} parent=35 // pred_check_branch
          %211 = sbr.rel (%p209) target = $region40
        $region39: #{tpu_custom_call.1} parent=35 // pred_region
          %s212 = sand.u32 %s28, 1
          %s213 = scalar_lea.sflag [#allocation5], %s212
          %s214 = sand.u32 %s28, 1
          %s215 = smul.addr %s214, 24
          %s216 = scalar_lea.vmem [#allocation4], %s215
          %s218 = ssub.s32 384, 384
          %219 = vsyncadd %s213, %s218
          %s220 = smul.addr %s18, 3
          %s221 = smul.addr %s220, 128
          %s222 = scalar_lea.hbm %s0, %s221
          %s224 = sshll.u32 %s216, 4
          %s225 = int_to_ptr.vmem [resolvable:$true] %s224
          %227 = dma.hbm_to_vmem [thread:$0]  %s222, 384, %s225, %s213
        $region40: #{tpu_custom_call.1} parent=35 // pred_fallthru
          _
      $region36: #{tpu_custom_call.1} parent=5 // pred_fallthru
        _
      %p228 = scmp.le.s32.totalorder 1, %s18
      %p229 = scmp.lt.s32.totalorder %s18, 3
      %p230 = pnand %p228, %p229
      %p231 = pneg %p230
      // Predicated region
      $region41: #{tpu_custom_call.1} parent=5 // pred_check
        _
      $region42: #{tpu_custom_call.1} parent=5 // pred_check_branch
        %233 = sbr.rel (%p230) target = $region44
      $region43: #{tpu_custom_call.1} parent=5 // pred_region
        %s234 = ssub.s32 %s18, 1
        %s235 = sand.u32 %s31, 1
        %s236 = scalar_lea.sflag [#allocation5], %s235
        %s237 = sand.u32 %s31, 1
        %s238 = smul.addr %s237, 24
        %s239 = scalar_lea.vmem [#allocation4], %s238
        // Predicated region
        $region45: #{tpu_custom_call.1} parent=43 // pred_check
          %p240 = pneg %p44
        $region46: #{tpu_custom_call.1} parent=43 // pred_check_branch
          %242 = sbr.rel (%p240) target = $region48
        $region47: #{tpu_custom_call.1} parent=43 // pred_region
          %243 = dma.done %s236, 384
        $region48: #{tpu_custom_call.1} parent=43 // pred_fallthru
          _
        %s244 = sand.u32 %s31, 1
        %s245 = scalar_lea.sflag [#allocation5], %s244
        %s246 = sand.u32 %s31, 1
        %s247 = smul.addr %s246, 24
        %s248 = scalar_lea.vmem [#allocation4], %s247
        %p249 = pneg %p44
        %p250 = pneg %p41
        %p251 = pneg %p65
        %p252 = pneg %p62
        %p253 = pneg %p86
        %p254 = pneg %p83
        %p255 = pneg %p107
        %p256 = pneg %p104
        %p257 = pneg %p128
        %p258 = pneg %p125
        %p259 = pneg %p149
        %p260 = pneg %p146
        %p261 = pneg %p175
        %p262 = pneg %p172
        %s263 = sand.u32 %s162, 1
        %s264 = scalar_lea.sflag [#allocation6], %s263
        %s265 = sand.u32 %s162, 1
        %s266 = smul.addr %s265, 24
        %s267 = scalar_lea.vmem [#allocation7], %s266
        %p268 = scmp.eq.s32.totalorder %s23, 0
        // Predicated region
        $region49: #{tpu_custom_call.1} parent=43 // pred_check
          %p269 = pneg %p268
        $region50: #{tpu_custom_call.1} parent=43 // pred_check_branch
          %271 = sbr.rel (%p269) target = $region52
        $region51: #{tpu_custom_call.1} parent=43 // pred_region
          %272 = vst [vmem:[#allocation2] sm:$0xff] 0.0
          %273 = vst [vmem:[#allocation2 + $0x8] sm:$0xff] 0.0
          %274 = vst [vmem:[#allocation2 + $0x10] sm:$0xff] 0.0
          %275 = vst [vmem:[#allocation2 + $0x18] sm:$0xff] 0.0
          %276 = vst [vmem:[#allocation2 + $0x20] sm:$0xff] 0.0
          %277 = vst [vmem:[#allocation3] sm:$0xff] 0.0
          %278 = vst [vmem:[#allocation3 + $0x8] sm:$0xff] 0.0
          %279 = vst [vmem:[#allocation3 + $0x10] sm:$0xff] 0.0
          %280 = vst [vmem:[#allocation3 + $0x18] sm:$0xff] 0.0
          %281 = vst [vmem:[#allocation3 + $0x20] sm:$0xff] 0.0
          %282 = vst [vmem:[#allocation3 + $0x28] sm:$0xff] 0.0
          %283 = vst [vmem:[#allocation3 + $0x30] sm:$0xff] 0.0
          %284 = vst [vmem:[#allocation3 + $0x38] sm:$0xff] 0.0
          %285 = vst [vmem:[#allocation3 + $0x40] sm:$0xff] 0.0
          %286 = vst [vmem:[#allocation3 + $0x48] sm:$0xff] 0.0
          %287 = vst [vmem:[#allocation3 + $0x50] sm:$0xff] 0.0
          %288 = vst [vmem:[#allocation3 + $0x58] sm:$0xff] 0.0
          %289 = vst [vmem:[#allocation3 + $0x60] sm:$0xff] 0.0
          %290 = vst [vmem:[#allocation3 + $0x68] sm:$0xff] 0.0
          %291 = vst [vmem:[#allocation3 + $0x70] sm:$0xff] 0.0
          %292 = vst [vmem:[#allocation3 + $0x78] sm:$0xff] 0.0
          %293 = vst [vmem:[#allocation3 + $0x80] sm:$0xff] 0.0
          %294 = vst [vmem:[#allocation3 + $0x88] sm:$0xff] 0.0
          %295 = vst [vmem:[#allocation3 + $0x90] sm:$0xff] 0.0
          %296 = vst [vmem:[#allocation3 + $0x98] sm:$0xff] 0.0
          %297 = vst [vmem:[#allocation3 + $0xa0] sm:$0xff] 0.0
          %298 = vst [vmem:[#allocation3 + $0xa8] sm:$0xff] 0.0
          %299 = vst [vmem:[#allocation3 + $0xb0] sm:$0xff] 0.0
          %300 = vst [vmem:[#allocation3 + $0xb8] sm:$0xff] 0.0
          %301 = vst [vmem:[#allocation3 + $0xc0] sm:$0xff] 0.0
          %302 = vst [vmem:[#allocation3 + $0xc8] sm:$0xff] 0.0
          %303 = vst [vmem:[#allocation3 + $0xd0] sm:$0xff] 0.0
        $region52: #{tpu_custom_call.1} parent=43 // pred_fallthru
          _
        %v304 = vld [vmem:[%s239] sm:$0xff]
        %v305 = vld [vmem:[%s239 + $0x8] sm:$0xff]
        %v306 = vld [vmem:[%s239 + $0x10] sm:$0xff]
        %307 = vst [vmem:[#allocation3] sm:$0xff] %v304
        %308 = vst [vmem:[#allocation3 + $0x8] sm:$0xff] %v305
        %vm309 = vcmask 556032
        %310 = vst.msk [vmem:[#allocation3 + $0x10] sm:$0xff] %vm309, %v306
        %v311 = vld [vmem:[%s239] sm:$0xff]
        %v312 = vld [vmem:[%s239 + $0x8] sm:$0xff]
        %v313 = vld [vmem:[%s239 + $0x10] sm:$0xff]
        %317 = vrot.lane.b32.xlu0 %v311, 127
        %v318 = vpop.permute.xlu0 %317
        %319 = vrot.lane.b32.xlu0 %v312, 127
        %v320 = vpop.permute.xlu0 %319
        %321 = vrot.lane.b32.xlu0 %v313, 127
        %v322 = vpop.permute.xlu0 %321
        %vm323 = vcmask 1039360
        %v324 = vsel %vm323, %v318, %v320
        %v325 = vsel %vm323, %v320, %v322
        %329 = vst [vmem:[#allocation3 + $0x18] sm:$0xff] %v324
        %330 = vst [vmem:[#allocation3 + $0x20] sm:$0xff] %v325
        %331 = vst.msk [vmem:[#allocation3 + $0x28] sm:$0xff] %vm309, %v322
        %v332 = vld [vmem:[%s239] sm:$0xff]
        %v333 = vld [vmem:[%s239 + $0x8] sm:$0xff]
        %v334 = vld [vmem:[%s239 + $0x10] sm:$0xff]
        %338 = vrot.lane.b32.xlu0 %v332, 126
        %v339 = vpop.permute.xlu0 %338
        %340 = vrot.lane.b32.xlu0 %v333, 126
        %v341 = vpop.permute.xlu0 %340
        %342 = vrot.lane.b32.xlu0 %v334, 126
        %v343 = vpop.permute.xlu0 %342
        %vm344 = vcmask 1031168
        %v345 = vsel %vm344, %v339, %v341
        %v346 = vsel %vm344, %v341, %v343
        %350 = vst [vmem:[#allocation3 + $0x30] sm:$0xff] %v345
        %351 = vst [vmem:[#allocation3 + $0x38] sm:$0xff] %v346
        %352 = vst.msk [vmem:[#allocation3 + $0x40] sm:$0xff] %vm309, %v343
        %v353 = vld [vmem:[%s239] sm:$0xff]
        %v354 = vld [vmem:[%s239 + $0x8] sm:$0xff]
        %v355 = vld [vmem:[%s239 + $0x10] sm:$0xff]
        %359 = vrot.lane.b32.xlu0 %v353, 110
        %v360 = vpop.permute.xlu0 %359
        %361 = vrot.lane.b32.xlu0 %v354, 110
        %v362 = vpop.permute.xlu0 %361
        %363 = vrot.lane.b32.xlu0 %v355, 110
        %v364 = vpop.permute.xlu0 %363
        %vm365 = vcmask 900096
        %v366 = vsel %vm365, %v360, %v362
        %v367 = vsel %vm365, %v362, %v364
        %371 = vst [vmem:[#allocation3 + $0x48] sm:$0xff] %v366
        %372 = vst [vmem:[#allocation3 + $0x50] sm:$0xff] %v367
        %373 = vst.msk [vmem:[#allocation3 + $0x58] sm:$0xff] %vm309, %v364
        %v374 = vld [vmem:[%s239] sm:$0xff]
        %v375 = vld [vmem:[%s239 + $0x8] sm:$0xff]
        %v376 = vld [vmem:[%s239 + $0x10] sm:$0xff]
        %380 = vrot.lane.b32.xlu0 %v374, 109
        %v381 = vpop.permute.xlu0 %380
        %382 = vrot.lane.b32.xlu0 %v375, 109
        %v383 = vpop.permute.xlu0 %382
        %384 = vrot.lane.b32.xlu0 %v376, 109
        %v385 = vpop.permute.xlu0 %384
        %vm386 = vcmask 891904
        %v387 = vsel %vm386, %v381, %v383
        %v388 = vsel %vm386, %v383, %v385
        %392 = vst [vmem:[#allocation3 + $0x60] sm:$0xff] %v387
        %393 = vst [vmem:[#allocation3 + $0x68] sm:$0xff] %v388
        %394 = vst.msk [vmem:[#allocation3 + $0x70] sm:$0xff] %vm309, %v385
        %v395 = vld [vmem:[%s239] sm:$0xff]
        %v396 = vld [vmem:[%s239 + $0x8] sm:$0xff]
        %v397 = vld [vmem:[%s239 + $0x10] sm:$0xff]
        %401 = vrot.lane.b32.xlu0 %v395, 108
        %v402 = vpop.permute.xlu0 %401
        %403 = vrot.lane.b32.xlu0 %v396, 108
        %v404 = vpop.permute.xlu0 %403
        %405 = vrot.lane.b32.xlu0 %v397, 108
        %v406 = vpop.permute.xlu0 %405
        %vm407 = vcmask 883712
        %v408 = vsel %vm407, %v402, %v404
        %v409 = vsel %vm407, %v404, %v406
        %413 = vst [vmem:[#allocation3 + $0x78] sm:$0xff] %v408
        %414 = vst [vmem:[#allocation3 + $0x80] sm:$0xff] %v409
        %415 = vst.msk [vmem:[#allocation3 + $0x88] sm:$0xff] %vm309, %v406
        %v416 = vld [vmem:[%s239] sm:$0xff]
        %v417 = vld [vmem:[%s239 + $0x8] sm:$0xff]
        %v418 = vld [vmem:[%s239 + $0x10] sm:$0xff]
        %422 = vrot.lane.b32.xlu0 %v416, 92
        %v423 = vpop.permute.xlu0 %422
        %424 = vrot.lane.b32.xlu0 %v417, 92
        %v425 = vpop.permute.xlu0 %424
        %426 = vrot.lane.b32.xlu0 %v418, 92
        %v427 = vpop.permute.xlu0 %426
        %vm428 = vcmask 752640
        %v429 = vsel %vm428, %v423, %v425
        %v430 = vsel %vm428, %v425, %v427
        %434 = vst [vmem:[#allocation3 + $0x90] sm:$0xff] %v429
        %435 = vst [vmem:[#allocation3 + $0x98] sm:$0xff] %v430
        %436 = vst.msk [vmem:[#allocation3 + $0xa0] sm:$0xff] %vm309, %v427
        %v437 = vld [vmem:[%s239] sm:$0xff]
        %v438 = vld [vmem:[%s239 + $0x8] sm:$0xff]
        %v439 = vld [vmem:[%s239 + $0x10] sm:$0xff]
        %443 = vrot.lane.b32.xlu0 %v437, 91
        %v444 = vpop.permute.xlu0 %443
        %445 = vrot.lane.b32.xlu0 %v438, 91
        %v446 = vpop.permute.xlu0 %445
        %447 = vrot.lane.b32.xlu0 %v439, 91
        %v448 = vpop.permute.xlu0 %447
        %vm449 = vcmask 744448
        %v450 = vsel %vm449, %v444, %v446
        %v451 = vsel %vm449, %v446, %v448
        %455 = vst [vmem:[#allocation3 + $0xa8] sm:$0xff] %v450
        %456 = vst [vmem:[#allocation3 + $0xb0] sm:$0xff] %v451
        %457 = vst.msk [vmem:[#allocation3 + $0xb8] sm:$0xff] %vm309, %v448
        %v458 = vld [vmem:[%s239] sm:$0xff]
        %v459 = vld [vmem:[%s239 + $0x8] sm:$0xff]
        %v460 = vld [vmem:[%s239 + $0x10] sm:$0xff]
        %464 = vrot.lane.b32.xlu0 %v458, 90
        %v465 = vpop.permute.xlu0 %464
        %466 = vrot.lane.b32.xlu0 %v459, 90
        %v467 = vpop.permute.xlu0 %466
        %468 = vrot.lane.b32.xlu0 %v460, 90
        %v469 = vpop.permute.xlu0 %468
        %vm470 = vcmask 736256
        %v471 = vsel %vm470, %v465, %v467
        %v472 = vsel %vm470, %v467, %v469
        %476 = vst [vmem:[#allocation3 + $0xc0] sm:$0xff] %v471
        %477 = vst [vmem:[#allocation3 + $0xc8] sm:$0xff] %v472
        %478 = vst.msk [vmem:[#allocation3 + $0xd0] sm:$0xff] %vm309, %v469
        %v479 = vld [vmem:[%s5] sm:$0x7]
        %v480 = vld [vmem:[%s1] sm:$0xff]
        %v481 = vld [vmem:[#allocation3] sm:$0xff]
        %v482 = vld [vmem:[#allocation3 + $0x8] sm:$0xff]
        %v483 = vld [vmem:[#allocation3 + $0x10] sm:$0xff]
        %v484 = vld [vmem:[#allocation3 + $0x18] sm:$0xff]
        %v485 = vld [vmem:[#allocation3 + $0x20] sm:$0xff]
        %v486 = vld [vmem:[#allocation3 + $0x28] sm:$0xff]
        %v487 = vld [vmem:[#allocation3 + $0x30] sm:$0xff]
        %v488 = vld [vmem:[#allocation3 + $0x38] sm:$0xff]
        %v489 = vld [vmem:[#allocation3 + $0x40] sm:$0xff]
        %v490 = vld [vmem:[#allocation3 + $0x48] sm:$0xff]
        %v491 = vld [vmem:[#allocation3 + $0x50] sm:$0xff]
        %v492 = vld [vmem:[#allocation3 + $0x58] sm:$0xff]
        %v493 = vld [vmem:[#allocation3 + $0x60] sm:$0xff]
        %v494 = vld [vmem:[#allocation3 + $0x68] sm:$0xff]
        %v495 = vld [vmem:[#allocation3 + $0x70] sm:$0xff]
        %v496 = vld [vmem:[#allocation3 + $0x78] sm:$0xff]
        %v497 = vld [vmem:[#allocation3 + $0x80] sm:$0xff]
        %v498 = vld [vmem:[#allocation3 + $0x88] sm:$0xff]
        %v499 = vld [vmem:[#allocation3 + $0x90] sm:$0xff]
        %v500 = vld [vmem:[#allocation3 + $0x98] sm:$0xff]
        %v501 = vld [vmem:[#allocation3 + $0xa0] sm:$0xff]
        %v502 = vld [vmem:[#allocation3 + $0xa8] sm:$0xff]
        %v503 = vld [vmem:[#allocation3 + $0xb0] sm:$0xff]
        %v504 = vld [vmem:[#allocation3 + $0xb8] sm:$0xff]
        %v505 = vld [vmem:[#allocation3 + $0xc0] sm:$0xff]
        %v506 = vld [vmem:[#allocation3 + $0xc8] sm:$0xff]
        %v507 = vld [vmem:[#allocation3 + $0xd0] sm:$0xff]
        %v508 = vld [vmem:[%s2] sm:$0xff]
        %510 = vset.pattern.permute.xlu0 0
        %511 = vperm.xlu0 %510, %v508
        %v512 = vpop.permute.xlu0 %511
        %vm514 = vcmask 588800
        %v516 = vsel %vm514, %v480, 0
        %518 = vmatprep.subr.mxu0 0.0
        %519 = vmatpush1.msra.mxu0 0.0
        %520 = vmatprep.subr.mxu0 0.0
        %521 = vmatpush1.msra.mxu0 0.0
        %522 = vmatprep.subr.mxu0 0.0
        %523 = vmatpush1.msra.mxu0 0.0
        %524 = vmatprep.subr.mxu0 0.0
        %525 = vmatpush1.msra.mxu0 0.0
        %526 = vmatprep.subr.mxu0 0.0
        %527 = vmatpush1.msra.mxu0 0.0
        %528 = vmatprep.subr.mxu0 0.0
        %529 = vmatpush1.msra.mxu0 0.0
        %530 = vmatprep.subr.mxu0 0.0
        %531 = vmatpush1.msra.mxu0 0.0
        %532 = vmatprep.subr.mxu0 %v506
        %533 = vmatpush1.msra.mxu0 %v505
        %534 = vmatprep.subr.mxu0 %v503
        %535 = vmatpush1.msra.mxu0 %v502
        %536 = vmatprep.subr.mxu0 %v500
        %537 = vmatpush1.msra.mxu0 %v499
        %538 = vmatprep.subr.mxu0 %v497
        %539 = vmatpush1.msra.mxu0 %v496
        %540 = vmatprep.subr.mxu0 %v494
        %541 = vmatpush1.msra.mxu0 %v493
        %542 = vmatprep.subr.mxu0 %v491
        %543 = vmatpush1.msra.mxu0 %v490
        %544 = vmatprep.subr.mxu0 %v488
        %545 = vmatpush1.msra.mxu0 %v487
        %546 = vmatprep.subr.mxu0 %v485
        %547 = vmatpush1.msra.mxu0 %v484
        %548 = vmatprep.subr.mxu0 %v482
        %549 = vmatpush1.msra.mxu0 %v481
        %550 = vmatprep.subr.mxu0 0.0
        %551 = vmatpush2.msra.mxu0 0.0
        %552 = vmatprep.subr.mxu0 0.0
        %553 = vmatpush2.msra.mxu0 0.0
        %554 = vmatprep.subr.mxu0 0.0
        %555 = vmatpush2.msra.mxu0 0.0
        %556 = vmatprep.subr.mxu0 0.0
        %557 = vmatpush2.msra.mxu0 0.0
        %558 = vmatprep.subr.mxu0 0.0
        %559 = vmatpush2.msra.mxu0 0.0
        %560 = vmatprep.subr.mxu0 0.0
        %561 = vmatpush2.msra.mxu0 0.0
        %562 = vmatprep.subr.mxu0 0.0
        %563 = vmatpush2.msra.mxu0 0.0
        %564 = vmatprep.subr.mxu0 0.0
        %565 = vmatpush2.msra.mxu0 0.0
        %566 = vmatprep.subr.mxu0 0.0
        %567 = vmatpush2.msra.mxu0 0.0
        %568 = vmatprep.subr.mxu0 0.0
        %569 = vmatpush2.msra.mxu0 0.0
        %570 = vmatprep.subr.mxu0 0.0
        %571 = vmatpush2.msra.mxu0 0.0
        %572 = vmatprep.subr.mxu0 0.0
        %573 = vmatpush2.msra.mxu0 0.0
        %574 = vmatprep.subr.mxu0 0.0
        %575 = vmatpush2.msra.mxu0 0.0
        %576 = vmatprep.subr.mxu0 0.0
        %577 = vmatpush2.msra.mxu0 0.0
        %578 = vmatprep.subr.mxu0 0.0
        %579 = vmatpush2.msra.mxu0 0.0
        %580 = vmatprep.subr.mxu0 0.0
        %581 = vmatpush2.msra.mxu0 0.0
        %582 = vmatprep.mubr.f32.mxu0 0.0
        %583 = vmatmul.mubr.f32.gmra.mxu0 %v516
        %v584 = vpop.f32.mrf.mxu0
        %v585 = vadd.f32 %v512, %v584
        %v586 = vpop.f32.mrf.mxu0
        %v587 = vadd.f32 %v512, %v586
        %588 = vdwg.mxu0
        %589 = vmatprep.subr.mxu0 0.0
        %590 = vmatpush1.msra.mxu0 0.0
        %591 = vmatprep.subr.mxu0 0.0
        %592 = vmatpush1.msra.mxu0 0.0
        %593 = vmatprep.subr.mxu0 0.0
        %594 = vmatpush1.msra.mxu0 0.0
        %595 = vmatprep.subr.mxu0 0.0
        %596 = vmatpush1.msra.mxu0 0.0
        %597 = vmatprep.subr.mxu0 0.0
        %598 = vmatpush1.msra.mxu0 0.0
        %599 = vmatprep.subr.mxu0 0.0
        %600 = vmatpush1.msra.mxu0 0.0
        %601 = vmatprep.subr.mxu0 0.0
        %602 = vmatpush1.msra.mxu0 0.0
        %603 = vmatprep.subr.mxu0 0.0
        %604 = vmatpush1.msra.mxu0 %v507
        %605 = vmatprep.subr.mxu0 0.0
        %606 = vmatpush1.msra.mxu0 %v504
        %607 = vmatprep.subr.mxu0 0.0
        %608 = vmatpush1.msra.mxu0 %v501
        %609 = vmatprep.subr.mxu0 0.0
        %610 = vmatpush1.msra.mxu0 %v498
        %611 = vmatprep.subr.mxu0 0.0
        %612 = vmatpush1.msra.mxu0 %v495
        %613 = vmatprep.subr.mxu0 0.0
        %614 = vmatpush1.msra.mxu0 %v492
        %615 = vmatprep.subr.mxu0 0.0
        %616 = vmatpush1.msra.mxu0 %v489
        %617 = vmatprep.subr.mxu0 0.0
        %618 = vmatpush1.msra.mxu0 %v486
        %619 = vmatprep.subr.mxu0 0.0
        %620 = vmatpush1.msra.mxu0 %v483
        %621 = vmatprep.subr.mxu0 0.0
        %622 = vmatpush2.msra.mxu0 0.0
        %623 = vmatprep.subr.mxu0 0.0
        %624 = vmatpush2.msra.mxu0 0.0
        %625 = vmatprep.subr.mxu0 0.0
        %626 = vmatpush2.msra.mxu0 0.0
        %627 = vmatprep.subr.mxu0 0.0
        %628 = vmatpush2.msra.mxu0 0.0
        %629 = vmatprep.subr.mxu0 0.0
        %630 = vmatpush2.msra.mxu0 0.0
        %631 = vmatprep.subr.mxu0 0.0
        %632 = vmatpush2.msra.mxu0 0.0
        %633 = vmatprep.subr.mxu0 0.0
        %634 = vmatpush2.msra.mxu0 0.0
        %635 = vmatprep.subr.mxu0 0.0
        %636 = vmatpush2.msra.mxu0 0.0
        %637 = vmatprep.subr.mxu0 0.0
        %638 = vmatpush2.msra.mxu0 0.0
        %639 = vmatprep.subr.mxu0 0.0
        %640 = vmatpush2.msra.mxu0 0.0
        %641 = vmatprep.subr.mxu0 0.0
        %642 = vmatpush2.msra.mxu0 0.0
        %643 = vmatprep.subr.mxu0 0.0
        %644 = vmatpush2.msra.mxu0 0.0
        %645 = vmatprep.subr.mxu0 0.0
        %646 = vmatpush2.msra.mxu0 0.0
        %647 = vmatprep.subr.mxu0 0.0
        %648 = vmatpush2.msra.mxu0 0.0
        %649 = vmatprep.subr.mxu0 0.0
        %650 = vmatpush2.msra.mxu0 0.0
        %651 = vmatprep.subr.mxu0 0.0
        %652 = vmatpush2.msra.mxu0 0.0
        %653 = vmatprep.mubr.f32.mxu0 0.0
        %654 = vmatmul.mubr.f32.gmra.mxu0 %v516
        %v655 = vpop.f32.mrf.mxu0
        %v656 = vadd.f32 %v512, %v655
        %v657 = vpop.f32.mrf.mxu0
        %658 = vdwg.mxu0
        %v659 = vmax.f32 %v585, 0.0
        %v660 = vmax.f32 %v587, 0.0
        %v661 = vmax.f32 %v656, 0.0
        %v663 = vlaneseq
        %v664 = vshrl.u32 %v663, 7
        %v665 = vsub.s32 0, %v664
        %v666 = vrot.slane %v479, %v665
        %v667 = vlaneseq
        %v668 = vshrl.u32 %v667, 7
        %v669 = vsub.s32 1, %v668
        %v670 = vrot.slane %v479, %v669
        %v671 = vlaneseq
        %v672 = vshrl.u32 %v671, 7
        %v673 = vsub.s32 2, %v672
        %v674 = vrot.slane %v479, %v673
        %v678 = vmul.f32 %v659, %v666
        %v679 = vmul.f32 %v660, %v670
        %v680 = vmul.f32 %v661, %v674
        %681 = vst [vmem:[#allocation2 + $0x8] sm:$0xff] %v678
        %682 = vst [vmem:[#allocation2 + $0x10] sm:$0xff] %v679
        %683 = vst.msk [vmem:[#allocation2 + $0x18] sm:$0xff] %vm309, %v680
        %v684 = vld [vmem:[#allocation2] sm:$0xff]
        %v685 = vld [vmem:[#allocation2 + $0x8] sm:$0xff]
        %v686 = vld [vmem:[#allocation2 + $0x10] sm:$0xff]
        %v687 = vld [vmem:[#allocation2 + $0x18] sm:$0xff]
        %692 = vrot.lane.b32.xlu0 %v684, 19
        %v693 = vpop.permute.xlu0 %692
        %694 = vrot.lane.b32.xlu0 %v685, 19
        %v695 = vpop.permute.xlu0 %694
        %696 = vrot.lane.b32.xlu0 %v686, 19
        %v697 = vpop.permute.xlu0 %696
        %698 = vrot.lane.b32.xlu0 %v687, 19
        %v699 = vpop.permute.xlu0 %698
        %vm700 = vcmask 154624
        %v701 = vsel %vm700, %v693, %v695
        %v702 = vsel %vm700, %v695, %v697
        %v703 = vsel %vm700, %v697, %v699
        %707 = vst [vmem:[#allocation3] sm:$0xff] %v701
        %708 = vst [vmem:[#allocation3 + $0x8] sm:$0xff] %v702
        %709 = vst [vmem:[#allocation3 + $0x10] sm:$0xff] %v703
        %v710 = vld [vmem:[#allocation2] sm:$0xff]
        %v711 = vld [vmem:[#allocation2 + $0x8] sm:$0xff]
        %v712 = vld [vmem:[#allocation2 + $0x10] sm:$0xff]
        %v713 = vld [vmem:[#allocation2 + $0x18] sm:$0xff]
        %718 = vrot.lane.b32.xlu0 %v710, 18
        %v719 = vpop.permute.xlu0 %718
        %720 = vrot.lane.b32.xlu0 %v711, 18
        %v721 = vpop.permute.xlu0 %720
        %722 = vrot.lane.b32.xlu0 %v712, 18
        %v723 = vpop.permute.xlu0 %722
        %724 = vrot.lane.b32.xlu0 %v713, 18
        %v725 = vpop.permute.xlu0 %724
        %vm726 = vcmask 146432
        %v727 = vsel %vm726, %v719, %v721
        %v728 = vsel %vm726, %v721, %v723
        %v729 = vsel %vm726, %v723, %v725
        %733 = vst [vmem:[#allocation3 + $0x18] sm:$0xff] %v727
        %734 = vst [vmem:[#allocation3 + $0x20] sm:$0xff] %v728
        %735 = vst [vmem:[#allocation3 + $0x28] sm:$0xff] %v729
        %v736 = vld [vmem:[#allocation2] sm:$0xff]
        %v737 = vld [vmem:[#allocation2 + $0x8] sm:$0xff]
        %v738 = vld [vmem:[#allocation2 + $0x10] sm:$0xff]
        %v739 = vld [vmem:[#allocation2 + $0x18] sm:$0xff]
        %744 = vrot.lane.b32.xlu0 %v736, 17
        %v745 = vpop.permute.xlu0 %744
        %746 = vrot.lane.b32.xlu0 %v737, 17
        %v747 = vpop.permute.xlu0 %746
        %748 = vrot.lane.b32.xlu0 %v738, 17
        %v749 = vpop.permute.xlu0 %748
        %750 = vrot.lane.b32.xlu0 %v739, 17
        %v751 = vpop.permute.xlu0 %750
        %vm752 = vcmask 138240
        %v753 = vsel %vm752, %v745, %v747
        %v754 = vsel %vm752, %v747, %v749
        %v755 = vsel %vm752, %v749, %v751
        %759 = vst [vmem:[#allocation3 + $0x30] sm:$0xff] %v753
        %760 = vst [vmem:[#allocation3 + $0x38] sm:$0xff] %v754
        %761 = vst [vmem:[#allocation3 + $0x40] sm:$0xff] %v755
        %v762 = vld [vmem:[#allocation2] sm:$0xff]
        %v763 = vld [vmem:[#allocation2 + $0x8] sm:$0xff]
        %v764 = vld [vmem:[#allocation2 + $0x10] sm:$0xff]
        %v765 = vld [vmem:[#allocation2 + $0x18] sm:$0xff]
        %770 = vrot.lane.b32.xlu0 %v762, 1
        %v771 = vpop.permute.xlu0 %770
        %772 = vrot.lane.b32.xlu0 %v763, 1
        %v773 = vpop.permute.xlu0 %772
        %774 = vrot.lane.b32.xlu0 %v764, 1
        %v775 = vpop.permute.xlu0 %774
        %776 = vrot.lane.b32.xlu0 %v765, 1
        %v777 = vpop.permute.xlu0 %776
        %vm778 = vcmask 7168
        %v779 = vsel %vm778, %v771, %v773
        %v780 = vsel %vm778, %v773, %v775
        %v781 = vsel %vm778, %v775, %v777
        %785 = vst [vmem:[#allocation3 + $0x48] sm:$0xff] %v779
        %786 = vst [vmem:[#allocation3 + $0x50] sm:$0xff] %v780
        %787 = vst [vmem:[#allocation3 + $0x58] sm:$0xff] %v781
        %v788 = vld [vmem:[#allocation2 + $0x8] sm:$0xff]
        %v789 = vld [vmem:[#allocation2 + $0x10] sm:$0xff]
        %v790 = vld [vmem:[#allocation2 + $0x18] sm:$0xff]
        %791 = vst [vmem:[#allocation3 + $0x60] sm:$0xff] %v788
        %792 = vst [vmem:[#allocation3 + $0x68] sm:$0xff] %v789
        %793 = vst [vmem:[#allocation3 + $0x70] sm:$0xff] %v790
        %v794 = vld [vmem:[#allocation2 + $0x8] sm:$0xff]
        %v795 = vld [vmem:[#allocation2 + $0x10] sm:$0xff]
        %v796 = vld [vmem:[#allocation2 + $0x18] sm:$0xff]
        %v797 = vld [vmem:[#allocation2 + $0x20] sm:$0xff]
        %802 = vrot.lane.b32.xlu0 %v794, 127
        %v803 = vpop.permute.xlu0 %802
        %804 = vrot.lane.b32.xlu0 %v795, 127
        %v805 = vpop.permute.xlu0 %804
        %806 = vrot.lane.b32.xlu0 %v796, 127
        %v807 = vpop.permute.xlu0 %806
        %808 = vrot.lane.b32.xlu0 %v797, 127
        %v809 = vpop.permute.xlu0 %808
        %v810 = vsel %vm323, %v803, %v805
        %v811 = vsel %vm323, %v805, %v807
        %v812 = vsel %vm323, %v807, %v809
        %816 = vst [vmem:[#allocation3 + $0x78] sm:$0xff] %v810
        %817 = vst [vmem:[#allocation3 + $0x80] sm:$0xff] %v811
        %818 = vst [vmem:[#allocation3 + $0x88] sm:$0xff] %v812
        %v819 = vld [vmem:[#allocation2 + $0x8] sm:$0xff]
        %v820 = vld [vmem:[#allocation2 + $0x10] sm:$0xff]
        %v821 = vld [vmem:[#allocation2 + $0x18] sm:$0xff]
        %v822 = vld [vmem:[#allocation2 + $0x20] sm:$0xff]
        %827 = vrot.lane.b32.xlu0 %v819, 111
        %v828 = vpop.permute.xlu0 %827
        %829 = vrot.lane.b32.xlu0 %v820, 111
        %v830 = vpop.permute.xlu0 %829
        %831 = vrot.lane.b32.xlu0 %v821, 111
        %v832 = vpop.permute.xlu0 %831
        %833 = vrot.lane.b32.xlu0 %v822, 111
        %v834 = vpop.permute.xlu0 %833
        %vm835 = vcmask 908288
        %v836 = vsel %vm835, %v828, %v830
        %v837 = vsel %vm835, %v830, %v832
        %v838 = vsel %vm835, %v832, %v834
        %842 = vst [vmem:[#allocation3 + $0x90] sm:$0xff] %v836
        %843 = vst [vmem:[#allocation3 + $0x98] sm:$0xff] %v837
        %844 = vst [vmem:[#allocation3 + $0xa0] sm:$0xff] %v838
        %v845 = vld [vmem:[#allocation2 + $0x8] sm:$0xff]
        %v846 = vld [vmem:[#allocation2 + $0x10] sm:$0xff]
        %v847 = vld [vmem:[#allocation2 + $0x18] sm:$0xff]
        %v848 = vld [vmem:[#allocation2 + $0x20] sm:$0xff]
        %853 = vrot.lane.b32.xlu0 %v845, 110
        %v854 = vpop.permute.xlu0 %853
        %855 = vrot.lane.b32.xlu0 %v846, 110
        %v856 = vpop.permute.xlu0 %855
        %857 = vrot.lane.b32.xlu0 %v847, 110
        %v858 = vpop.permute.xlu0 %857
        %859 = vrot.lane.b32.xlu0 %v848, 110
        %v860 = vpop.permute.xlu0 %859
        %v861 = vsel %vm365, %v854, %v856
        %v862 = vsel %vm365, %v856, %v858
        %v863 = vsel %vm365, %v858, %v860
        %867 = vst [vmem:[#allocation3 + $0xa8] sm:$0xff] %v861
        %868 = vst [vmem:[#allocation3 + $0xb0] sm:$0xff] %v862
        %869 = vst [vmem:[#allocation3 + $0xb8] sm:$0xff] %v863
        %v870 = vld [vmem:[#allocation2 + $0x8] sm:$0xff]
        %v871 = vld [vmem:[#allocation2 + $0x10] sm:$0xff]
        %v872 = vld [vmem:[#allocation2 + $0x18] sm:$0xff]
        %v873 = vld [vmem:[#allocation2 + $0x20] sm:$0xff]
        %878 = vrot.lane.b32.xlu0 %v870, 109
        %v879 = vpop.permute.xlu0 %878
        %880 = vrot.lane.b32.xlu0 %v871, 109
        %v881 = vpop.permute.xlu0 %880
        %882 = vrot.lane.b32.xlu0 %v872, 109
        %v883 = vpop.permute.xlu0 %882
        %884 = vrot.lane.b32.xlu0 %v873, 109
        %v885 = vpop.permute.xlu0 %884
        %v886 = vsel %vm386, %v879, %v881
        %v887 = vsel %vm386, %v881, %v883
        %v888 = vsel %vm386, %v883, %v885
        %892 = vst [vmem:[#allocation3 + $0xc0] sm:$0xff] %v886
        %893 = vst [vmem:[#allocation3 + $0xc8] sm:$0xff] %v887
        %894 = vst [vmem:[#allocation3 + $0xd0] sm:$0xff] %v888
        %v895 = vld [vmem:[%s3] sm:$0xff]
        %v896 = vld [vmem:[#allocation3] sm:$0xff]
        %v897 = vld [vmem:[#allocation3 + $0x8] sm:$0xff]
        %v898 = vld [vmem:[#allocation3 + $0x10] sm:$0xff]
        %v899 = vld [vmem:[#allocation3 + $0x18] sm:$0xff]
        %v900 = vld [vmem:[#allocation3 + $0x20] sm:$0xff]
        %v901 = vld [vmem:[#allocation3 + $0x28] sm:$0xff]
        %v902 = vld [vmem:[#allocation3 + $0x30] sm:$0xff]
        %v903 = vld [vmem:[#allocation3 + $0x38] sm:$0xff]
        %v904 = vld [vmem:[#allocation3 + $0x40] sm:$0xff]
        %v905 = vld [vmem:[#allocation3 + $0x48] sm:$0xff]
        %v906 = vld [vmem:[#allocation3 + $0x50] sm:$0xff]
        %v907 = vld [vmem:[#allocation3 + $0x58] sm:$0xff]
        %v908 = vld [vmem:[#allocation3 + $0x60] sm:$0xff]
        %v909 = vld [vmem:[#allocation3 + $0x68] sm:$0xff]
        %v910 = vld [vmem:[#allocation3 + $0x70] sm:$0xff]
        %v911 = vld [vmem:[#allocation3 + $0x78] sm:$0xff]
        %v912 = vld [vmem:[#allocation3 + $0x80] sm:$0xff]
        %v913 = vld [vmem:[#allocation3 + $0x88] sm:$0xff]
        %v914 = vld [vmem:[#allocation3 + $0x90] sm:$0xff]
        %v915 = vld [vmem:[#allocation3 + $0x98] sm:$0xff]
        %v916 = vld [vmem:[#allocation3 + $0xa0] sm:$0xff]
        %v917 = vld [vmem:[#allocation3 + $0xa8] sm:$0xff]
        %v918 = vld [vmem:[#allocation3 + $0xb0] sm:$0xff]
        %v919 = vld [vmem:[#allocation3 + $0xb8] sm:$0xff]
        %v920 = vld [vmem:[#allocation3 + $0xc0] sm:$0xff]
        %v921 = vld [vmem:[#allocation3 + $0xc8] sm:$0xff]
        %v922 = vld [vmem:[#allocation3 + $0xd0] sm:$0xff]
        %v923 = vld [vmem:[%s4] sm:$0xff]
        %925 = vset.pattern.permute.xlu0 0
        %926 = vperm.xlu0 %925, %v923
        %v927 = vpop.permute.xlu0 %926
        %v930 = vsel %vm514, %v895, 0
        %932 = vmatprep.subr.mxu0 0.0
        %933 = vmatpush1.msra.mxu0 0.0
        %934 = vmatprep.subr.mxu0 0.0
        %935 = vmatpush1.msra.mxu0 0.0
        %936 = vmatprep.subr.mxu0 0.0
        %937 = vmatpush1.msra.mxu0 0.0
        %938 = vmatprep.subr.mxu0 0.0
        %939 = vmatpush1.msra.mxu0 0.0
        %940 = vmatprep.subr.mxu0 0.0
        %941 = vmatpush1.msra.mxu0 0.0
        %942 = vmatprep.subr.mxu0 0.0
        %943 = vmatpush1.msra.mxu0 0.0
        %944 = vmatprep.subr.mxu0 0.0
        %945 = vmatpush1.msra.mxu0 0.0
        %946 = vmatprep.subr.mxu0 %v921
        %947 = vmatpush1.msra.mxu0 %v920
        %948 = vmatprep.subr.mxu0 %v918
        %949 = vmatpush1.msra.mxu0 %v917
        %950 = vmatprep.subr.mxu0 %v915
        %951 = vmatpush1.msra.mxu0 %v914
        %952 = vmatprep.subr.mxu0 %v912
        %953 = vmatpush1.msra.mxu0 %v911
        %954 = vmatprep.subr.mxu0 %v909
        %955 = vmatpush1.msra.mxu0 %v908
        %956 = vmatprep.subr.mxu0 %v906
        %957 = vmatpush1.msra.mxu0 %v905
        %958 = vmatprep.subr.mxu0 %v903
        %959 = vmatpush1.msra.mxu0 %v902
        %960 = vmatprep.subr.mxu0 %v900
        %961 = vmatpush1.msra.mxu0 %v899
        %962 = vmatprep.subr.mxu0 %v897
        %963 = vmatpush1.msra.mxu0 %v896
        %964 = vmatprep.subr.mxu0 0.0
        %965 = vmatpush2.msra.mxu0 0.0
        %966 = vmatprep.subr.mxu0 0.0
        %967 = vmatpush2.msra.mxu0 0.0
        %968 = vmatprep.subr.mxu0 0.0
        %969 = vmatpush2.msra.mxu0 0.0
        %970 = vmatprep.subr.mxu0 0.0
        %971 = vmatpush2.msra.mxu0 0.0
        %972 = vmatprep.subr.mxu0 0.0
        %973 = vmatpush2.msra.mxu0 0.0
        %974 = vmatprep.subr.mxu0 0.0
        %975 = vmatpush2.msra.mxu0 0.0
        %976 = vmatprep.subr.mxu0 0.0
        %977 = vmatpush2.msra.mxu0 0.0
        %978 = vmatprep.subr.mxu0 0.0
        %979 = vmatpush2.msra.mxu0 0.0
        %980 = vmatprep.subr.mxu0 0.0
        %981 = vmatpush2.msra.mxu0 0.0
        %982 = vmatprep.subr.mxu0 0.0
        %983 = vmatpush2.msra.mxu0 0.0
        %984 = vmatprep.subr.mxu0 0.0
        %985 = vmatpush2.msra.mxu0 0.0
        %986 = vmatprep.subr.mxu0 0.0
        %987 = vmatpush2.msra.mxu0 0.0
        %988 = vmatprep.subr.mxu0 0.0
        %989 = vmatpush2.msra.mxu0 0.0
        %990 = vmatprep.subr.mxu0 0.0
        %991 = vmatpush2.msra.mxu0 0.0
        %992 = vmatprep.subr.mxu0 0.0
        %993 = vmatpush2.msra.mxu0 0.0
        %994 = vmatprep.subr.mxu0 0.0
        %995 = vmatpush2.msra.mxu0 0.0
        %996 = vmatprep.mubr.f32.mxu0 0.0
        %997 = vmatmul.mubr.f32.gmra.mxu0 %v930
        %v998 = vpop.f32.mrf.mxu0
        %v999 = vadd.f32 %v927, %v998
        %v1000 = vpop.f32.mrf.mxu0
        %v1001 = vadd.f32 %v927, %v1000
        %1002 = vdwg.mxu0
        %1003 = vmatprep.subr.mxu0 0.0
        %1004 = vmatpush1.msra.mxu0 0.0
        %1005 = vmatprep.subr.mxu0 0.0
        %1006 = vmatpush1.msra.mxu0 0.0
        %1007 = vmatprep.subr.mxu0 0.0
        %1008 = vmatpush1.msra.mxu0 0.0
        %1009 = vmatprep.subr.mxu0 0.0
        %1010 = vmatpush1.msra.mxu0 0.0
        %1011 = vmatprep.subr.mxu0 0.0
        %1012 = vmatpush1.msra.mxu0 0.0
        %1013 = vmatprep.subr.mxu0 0.0
        %1014 = vmatpush1.msra.mxu0 0.0
        %1015 = vmatprep.subr.mxu0 0.0
        %1016 = vmatpush1.msra.mxu0 0.0
        %1017 = vmatprep.subr.mxu0 0.0
        %1018 = vmatpush1.msra.mxu0 %v922
        %1019 = vmatprep.subr.mxu0 0.0
        %1020 = vmatpush1.msra.mxu0 %v919
        %1021 = vmatprep.subr.mxu0 0.0
        %1022 = vmatpush1.msra.mxu0 %v916
        %1023 = vmatprep.subr.mxu0 0.0
        %1024 = vmatpush1.msra.mxu0 %v913
        %1025 = vmatprep.subr.mxu0 0.0
        %1026 = vmatpush1.msra.mxu0 %v910
        %1027 = vmatprep.subr.mxu0 0.0
        %1028 = vmatpush1.msra.mxu0 %v907
        %1029 = vmatprep.subr.mxu0 0.0
        %1030 = vmatpush1.msra.mxu0 %v904
        %1031 = vmatprep.subr.mxu0 0.0
        %1032 = vmatpush1.msra.mxu0 %v901
        %1033 = vmatprep.subr.mxu0 0.0
        %1034 = vmatpush1.msra.mxu0 %v898
        %1035 = vmatprep.subr.mxu0 0.0
        %1036 = vmatpush2.msra.mxu0 0.0
        %1037 = vmatprep.subr.mxu0 0.0
        %1038 = vmatpush2.msra.mxu0 0.0
        %1039 = vmatprep.subr.mxu0 0.0
        %1040 = vmatpush2.msra.mxu0 0.0
        %1041 = vmatprep.subr.mxu0 0.0
        %1042 = vmatpush2.msra.mxu0 0.0
        %1043 = vmatprep.subr.mxu0 0.0
        %1044 = vmatpush2.msra.mxu0 0.0
        %1045 = vmatprep.subr.mxu0 0.0
        %1046 = vmatpush2.msra.mxu0 0.0
        %1047 = vmatprep.subr.mxu0 0.0
        %1048 = vmatpush2.msra.mxu0 0.0
        %1049 = vmatprep.subr.mxu0 0.0
        %1050 = vmatpush2.msra.mxu0 0.0
        %1051 = vmatprep.subr.mxu0 0.0
        %1052 = vmatpush2.msra.mxu0 0.0
        %1053 = vmatprep.subr.mxu0 0.0
        %1054 = vmatpush2.msra.mxu0 0.0
        %1055 = vmatprep.subr.mxu0 0.0
        %1056 = vmatpush2.msra.mxu0 0.0
        %1057 = vmatprep.subr.mxu0 0.0
        %1058 = vmatpush2.msra.mxu0 0.0
        %1059 = vmatprep.subr.mxu0 0.0
        %1060 = vmatpush2.msra.mxu0 0.0
        %1061 = vmatprep.subr.mxu0 0.0
        %1062 = vmatpush2.msra.mxu0 0.0
        %1063 = vmatprep.subr.mxu0 0.0
        %1064 = vmatpush2.msra.mxu0 0.0
        %1065 = vmatprep.subr.mxu0 0.0
        %1066 = vmatpush2.msra.mxu0 0.0
        %1067 = vmatprep.mubr.f32.mxu0 0.0
        %1068 = vmatmul.mubr.f32.gmra.mxu0 %v930
        %v1069 = vpop.f32.mrf.mxu0
        %v1070 = vadd.f32 %v927, %v1069
        %v1071 = vpop.f32.mrf.mxu0
        %1072 = vdwg.mxu0
        %v1073 = vmax.f32 %v999, 0.0
        %v1074 = vmax.f32 %v1001, 0.0
        %v1075 = vmax.f32 %v1070, 0.0
        %1076 = vst [vmem:[%s267] sm:$0xff] %v1073
        %1077 = vst [vmem:[%s267 + $0x8] sm:$0xff] %v1074
        %1078 = vst.msk [vmem:[%s267 + $0x10] sm:$0xff] %vm309, %v1075
        %s1079 = sand.u32 %s162, 1
        %s1080 = scalar_lea.sflag [#allocation6], %s1079
        %s1081 = sand.u32 %s162, 1
        %s1082 = smul.addr %s1081, 24
        %s1083 = scalar_lea.vmem [#allocation7], %s1082
        // Predicated region
        $region53: #{tpu_custom_call.1} parent=43 // pred_check
          %p1084 = pneg %p172
        $region54: #{tpu_custom_call.1} parent=43 // pred_check_branch
          %1086 = sbr.rel (%p1084) target = $region56
        $region55: #{tpu_custom_call.1} parent=43 // pred_region
          %s1088 = ssub.s32 384, 384
          %1089 = vsyncadd %s1080, %s1088
          %s1090 = smul.addr %s23, 3
          %s1091 = smul.addr %s1090, 128
          %s1092 = scalar_lea.hbm %s6, %s1091
          %s1094 = sshll.u32 %s1083, 4
          %s1095 = int_to_ptr.vmem [resolvable:$true] %s1094
          %1097 = dma.vmem_to_hbm [thread:$0]  %s1095, 384, %s1092, %s1080
        $region56: #{tpu_custom_call.1} parent=43 // pred_fallthru
          _
      $region44: #{tpu_custom_call.1} parent=5 // pred_fallthru
        _
      %p1098 = scmp.le.s32.totalorder 2, %s18
      // Predicated region
      $region57: #{tpu_custom_call.1} parent=5 // pred_check
        %p1099 = pneg %p1098
      $region58: #{tpu_custom_call.1} parent=5 // pred_check_branch
        %1101 = sbr.rel (%p1099) target = $region60
      $region59: #{tpu_custom_call.1} parent=5 // pred_region
        %s1102 = ssub.s32 %s18, 2
        // Predicated region
        $region61: #{tpu_custom_call.1} parent=59 // pred_check
          %p1103 = pneg %p178
        $region62: #{tpu_custom_call.1} parent=59 // pred_check_branch
          %1105 = sbr.rel (%p1103) target = $region64
        $region63: #{tpu_custom_call.1} parent=59 // pred_region
          %s1106 = sand.u32 %s163, 1
          %s1107 = scalar_lea.sflag [#allocation6], %s1106
          %s1108 = sand.u32 %s163, 1
          %s1109 = smul.addr %s1108, 24
          %s1110 = scalar_lea.vmem [#allocation7], %s1109
          %1111 = dma.done %s1107, 384
        $region64: #{tpu_custom_call.1} parent=59 // pred_fallthru
          _
      $region60: #{tpu_custom_call.1} parent=5 // pred_fallthru
        _
    $region6: #{tpu_custom_call.1} parent=1 // loop_footer
      %s22 = sadd.s32 1, %s18
    $region7: #{tpu_custom_call.1} parent=1 // loop_footer_branch
      %17 = sbr.rel target = $region3
    $region8: #{tpu_custom_call.1} parent=1 // loop_exit
      _
    %1112 = vsyncpa [#allocation5], 1
    %s1113 = scalar_lea.sflag [#allocation5], 1
    %1114 = vsyncpa %s1113, 1
    %1115 = vsyncpa [#allocation6], 1
    %s1116 = scalar_lea.sflag [#allocation6], 1
    %1117 = vsyncpa %s1116, 1

</llo_original>
